<compile_context>
chip_gen: v5e
topology: v5e:2x2
jax: 0.10.0
libtpu: 0.0.40
codegen_flags: <defaults>
</compile_context>

<pallas_src>
import functools
import math

import jax
import jax.numpy as jnp
from jax.experimental import pallas as pl
from jax.experimental.pallas import tpu as pltpu

LEAKY_SLOPE = 0.2
_LANE = 128


def _round_up(x, m):
    return ((x + m - 1) // m) * m


def _disc_kernel(x_ref,
                 w1_ref, b1_ref,
                 w2_ref, b2_ref,
                 w3_ref, b3_ref,
                 w4_ref, b4_ref,
                 o_ref):
    """Fused 4-layer MLP discriminator forward for one batch tile.

    Matmul operands are bf16 (MXU), accumulation / bias / LeakyReLU / sigmoid
    run in f32 on the VPU/EUP.
    """
    def leaky(h):
        # slope < 1  =>  leaky_relu(h) == max(h, slope*h); single vmax.
        return jnp.maximum(h, LEAKY_SLOPE * h)

    x = x_ref[...]                                                    # (tb, Kp) bf16
    h = jnp.dot(x, w1_ref[...], preferred_element_type=jnp.float32) + b1_ref[...]
    h = leaky(h).astype(jnp.bfloat16)
    h = jnp.dot(h, w2_ref[...], preferred_element_type=jnp.float32) + b2_ref[...]
    h = leaky(h).astype(jnp.bfloat16)
    h = jnp.dot(h, w3_ref[...], preferred_element_type=jnp.float32) + b3_ref[...]
    h = leaky(h).astype(jnp.bfloat16)
    # final layer padded to 128 output columns -> lane-dense (tb,128) store.
    logit = jnp.dot(h, w4_ref[...], preferred_element_type=jnp.float32) + b4_ref[...]
    o_ref[...] = (pl.reciprocal(1.0 + jnp.exp(-logit), approx=True)).astype(o_ref.dtype)


@functools.partial(jax.jit, static_argnames=("batch_tile",))
def discriminator_forward(x_nchw, params, *, batch_tile=256):
    """Run the fused discriminator kernel.

    x_nchw : (B, C, H, W) float32, NCHW like PyTorch.
    params : dict with w1..w4 (in,out) and b1..b4 (1,out) float32 arrays.
    Returns (B, 1) float32 sigmoid outputs.
    """
    B = x_nchw.shape[0]
    in_nodes = math.prod(x_nchw.shape[1:])
    x2d = x_nchw.reshape(B, in_nodes).astype(jnp.float32)

    # --- pad flattened-feature dim K to a lane multiple (784 -> 896) ---
    Kp = _round_up(in_nodes, _LANE)
    w1 = params["w1"]
    if Kp != in_nodes:
        x2d = jnp.pad(x2d, ((0, 0), (0, Kp - in_nodes)))
        w1 = jnp.pad(w1, ((0, Kp - in_nodes), (0, 0)))

    # --- pad the final layer's single output column to 128 (lane-dense out) ---
    w4 = jnp.pad(params["w4"], ((0, 0), (0, _LANE - params["w4"].shape[1])))
    b4 = jnp.pad(params["b4"], ((0, 0), (0, _LANE - params["b4"].shape[1])))

    # --- batch tiling (pad batch to a tile multiple if needed) ---
    tb = min(batch_tile, _round_up(B, 8))
    Bp = _round_up(B, tb)
    if Bp != B:
        x2d = jnp.pad(x2d, ((0, Bp - B), (0, 0)))
    grid = (Bp // tb,)

    # bf16 MXU operands; biases stay f32 for the f32 epilogue math.
    x_bf = x2d.astype(jnp.bfloat16)
    w1b = w1.astype(jnp.bfloat16)
    w2b = params["w2"].astype(jnp.bfloat16)
    w3b = params["w3"].astype(jnp.bfloat16)
    w4b = w4.astype(jnp.bfloat16)
    b1 = params["b1"].astype(jnp.float32)
    b2 = params["b2"].astype(jnp.float32)
    b3 = params["b3"].astype(jnp.float32)
    b4 = b4.astype(jnp.float32)

    def full2d(arr):
        # whole-array block, same block index every grid step (stays in VMEM)
        return pl.BlockSpec(arr.shape, lambda i: (0, 0))

    out = pl.pallas_call(
        _disc_kernel,
        out_shape=jax.ShapeDtypeStruct((Bp, _LANE), jnp.float32),
        grid_spec=pltpu.PrefetchScalarGridSpec(
            num_scalar_prefetch=0,
            grid=grid,
            in_specs=[
                pl.BlockSpec((tb, Kp), lambda i: (i, 0)),   # x batch tile
                full2d(w1b), full2d(b1),
                full2d(w2b), full2d(b2),
                full2d(w3b), full2d(b3),
                full2d(w4b), full2d(b4),
            ],
            out_specs=pl.BlockSpec((tb, _LANE), lambda i: (i, 0)),
        ),
        compiler_params=pltpu.CompilerParams(
            dimension_semantics=("parallel",),
        ),
    )(x_bf, w1b, b1, w2b, b2, w3b, b3, w4b, b4)

    # drop batch padding and keep only the real (single) output column
    return out[:B, :1]


def init_params(key, input_nodes):
    """Deterministic init mimicking nn.Linear default (U(-1/sqrt(in), 1/sqrt(in)))."""
    dims = [(input_nodes, 512), (512, 256), (256, 128), (128, 1)]
    params = {}
    for idx, (fan_in, fan_out) in enumerate(dims, start=1):
        key, kw, kb = jax.random.split(key, 3)
        bound = 1.0 / (fan_in ** 0.5)
        params[f"w{idx}"] = jax.random.uniform(
            kw, (fan_in, fan_out), jnp.float32, minval=-bound, maxval=bound)
        params[f"b{idx}"] = jax.random.uniform(
            kb, (1, fan_out), jnp.float32, minval=-bound, maxval=bound)
    return params


if __name__ == "__main__":
    key = jax.random.PRNGKey(0)
    k_x, k_p = jax.random.split(key)

    # Small MNIST-like example: B=64, flattened input 1*28*28=784.
    # batch_tile=32 -> grid=(2,) so the batch-tiling path is exercised.
    B, C, H, W = 64, 1, 28, 28
    input_nodes = C * H * W

    x = jax.random.normal(k_x, (B, C, H, W), jnp.float32)
    params = init_params(k_p, input_nodes)

    out = jax.block_until_ready(discriminator_forward(x, params, batch_tile=32))

    # sanity: shape (B,1), finite, in [0,1] (tiny slack for approx reciprocal)
    assert out.shape == (B, 1)
    assert bool(jnp.all(jnp.isfinite(out)))
    assert bool(jnp.all((out > -1e-3) & (out < 1.0 + 1e-3)))

    # cross-check against a plain-JAX f32 reference (kernel uses bf16 matmul
    # operands with f32 accumulation, so tolerance is loosened accordingly)
    def ref(x_nchw, p):
        h = x_nchw.reshape(x_nchw.shape[0], -1)
        for i in range(1, 4):
            h = h @ p[f"w{i}"] + p[f"b{i}"]
            h = jnp.where(h > 0, h, 0.2 * h)
        return jax.nn.sigmoid(h @ p["w4"] + p["b4"])

    ref_out = ref(x, params)
    assert bool(jnp.allclose(out, ref_out, atol=2e-2, rtol=0.0)), (
        float(jnp.max(jnp.abs(out - ref_out))))

    print("KERNEL_OK")
</pallas_src>

<mosaic_0001>
module attributes {stable_mosaic.version = 11 : i64} {
  func.func @_disc_kernel(%arg0: i32, %arg1: memref<32x896xbf16, #tpu.memory_space<vmem>>, %arg2: memref<896x512xbf16, #tpu.memory_space<vmem>>, %arg3: memref<1x512xf32, #tpu.memory_space<vmem>>, %arg4: memref<512x256xbf16, #tpu.memory_space<vmem>>, %arg5: memref<1x256xf32, #tpu.memory_space<vmem>>, %arg6: memref<256x128xbf16, #tpu.memory_space<vmem>>, %arg7: memref<1x128xf32, #tpu.memory_space<vmem>>, %arg8: memref<128x128xbf16, #tpu.memory_space<vmem>>, %arg9: memref<1x128xf32, #tpu.memory_space<vmem>>, %arg10: memref<32x128xf32, #tpu.memory_space<vmem>>) attributes {dimension_semantics = [#tpu.dimension_semantics<parallel>], iteration_bounds = array<i64: 2>, scalar_prefetch = 0 : i64, scratch_operands = 0 : i64, tpu.core_type = #tpu.core_type<tc>, window_params = [{transform_indices = @transform_0, window_bounds = array<i64: 32, 896>}, {pipeline_mode = #tpu.pipeline_mode<synchronous>, transform_indices = @transform_1, window_bounds = array<i64: 896, 512>}, {pipeline_mode = #tpu.pipeline_mode<synchronous>, transform_indices = @transform_2, window_bounds = array<i64: 1, 512>}, {pipeline_mode = #tpu.pipeline_mode<synchronous>, transform_indices = @transform_3, window_bounds = array<i64: 512, 256>}, {pipeline_mode = #tpu.pipeline_mode<synchronous>, transform_indices = @transform_4, window_bounds = array<i64: 1, 256>}, {pipeline_mode = #tpu.pipeline_mode<synchronous>, transform_indices = @transform_5, window_bounds = array<i64: 256, 128>}, {pipeline_mode = #tpu.pipeline_mode<synchronous>, transform_indices = @transform_6, window_bounds = array<i64: 1, 128>}, {pipeline_mode = #tpu.pipeline_mode<synchronous>, transform_indices = @transform_7, window_bounds = array<i64: 128, 128>}, {pipeline_mode = #tpu.pipeline_mode<synchronous>, transform_indices = @transform_8, window_bounds = array<i64: 1, 128>}, {transform_indices = @transform_9, window_bounds = array<i64: 32, 128>}]} {
    %c0 = arith.constant 0 : index
    %c0_0 = arith.constant 0 : index
    %0 = vector.load %arg1[%c0, %c0_0] : memref<32x896xbf16, #tpu.memory_space<vmem>>, vector<32x896xbf16>
    %c0_1 = arith.constant 0 : index
    %c0_2 = arith.constant 0 : index
    %1 = vector.load %arg2[%c0_1, %c0_2] : memref<896x512xbf16, #tpu.memory_space<vmem>>, vector<896x512xbf16>
    %cst = arith.constant dense<0.000000e+00> : vector<32x512xf32>
    %2 = tpu.matmul %0, %1, %cst {dimension_numbers = #tpu.dot_dimension_numbers<[1], [0], [0], [1], [0, 0, 1, 1], [], []>} : vector<32x896xbf16>, vector<896x512xbf16>, vector<32x512xf32> -> vector<32x512xf32>
    %c0_3 = arith.constant 0 : index
    %c0_4 = arith.constant 0 : index
    %3 = vector.load %arg3[%c0_3, %c0_4] : memref<1x512xf32, #tpu.memory_space<vmem>>, vector<1x512xf32>
    %4 = vector.broadcast %3 : vector<1x512xf32> to vector<32x512xf32>
    %5 = arith.addf %2, %4 : vector<32x512xf32>
    %cst_5 = arith.constant 2.000000e-01 : f32
    %6 = vector.broadcast %cst_5 : f32 to vector<32x512xf32>
    %7 = arith.mulf %6, %5 : vector<32x512xf32>
    %8 = arith.maximumf %5, %7 : vector<32x512xf32>
    %9 = arith.truncf %8 : vector<32x512xf32> to vector<32x512xbf16>
    %c0_6 = arith.constant 0 : index
    %c0_7 = arith.constant 0 : index
    %10 = vector.load %arg4[%c0_6, %c0_7] : memref<512x256xbf16, #tpu.memory_space<vmem>>, vector<512x256xbf16>
    %cst_8 = arith.constant dense<0.000000e+00> : vector<32x256xf32>
    %11 = tpu.matmul %9, %10, %cst_8 {dimension_numbers = #tpu.dot_dimension_numbers<[1], [0], [0], [1], [0, 0, 1, 1], [], []>} : vector<32x512xbf16>, vector<512x256xbf16>, vector<32x256xf32> -> vector<32x256xf32>
    %c0_9 = arith.constant 0 : index
    %c0_10 = arith.constant 0 : index
    %12 = vector.load %arg5[%c0_9, %c0_10] : memref<1x256xf32, #tpu.memory_space<vmem>>, vector<1x256xf32>
    %13 = vector.broadcast %12 : vector<1x256xf32> to vector<32x256xf32>
    %14 = arith.addf %11, %13 : vector<32x256xf32>
    %cst_11 = arith.constant 2.000000e-01 : f32
    %15 = vector.broadcast %cst_11 : f32 to vector<32x256xf32>
    %16 = arith.mulf %15, %14 : vector<32x256xf32>
    %17 = arith.maximumf %14, %16 : vector<32x256xf32>
    %18 = arith.truncf %17 : vector<32x256xf32> to vector<32x256xbf16>
    %c0_12 = arith.constant 0 : index
    %c0_13 = arith.constant 0 : index
    %19 = vector.load %arg6[%c0_12, %c0_13] : memref<256x128xbf16, #tpu.memory_space<vmem>>, vector<256x128xbf16>
    %cst_14 = arith.constant dense<0.000000e+00> : vector<32x128xf32>
    %20 = tpu.matmul %18, %19, %cst_14 {dimension_numbers = #tpu.dot_dimension_numbers<[1], [0], [0], [1], [0, 0, 1, 1], [], []>} : vector<32x256xbf16>, vector<256x128xbf16>, vector<32x128xf32> -> vector<32x128xf32>
    %c0_15 = arith.constant 0 : index
    %c0_16 = arith.constant 0 : index
    %21 = vector.load %arg7[%c0_15, %c0_16] : memref<1x128xf32, #tpu.memory_space<vmem>>, vector<1x128xf32>
    %22 = vector.broadcast %21 : vector<1x128xf32> to vector<32x128xf32>
    %23 = arith.addf %20, %22 : vector<32x128xf32>
    %cst_17 = arith.constant 2.000000e-01 : f32
    %24 = vector.broadcast %cst_17 : f32 to vector<32x128xf32>
    %25 = arith.mulf %24, %23 : vector<32x128xf32>
    %26 = arith.maximumf %23, %25 : vector<32x128xf32>
    %27 = arith.truncf %26 : vector<32x128xf32> to vector<32x128xbf16>
    %c0_18 = arith.constant 0 : index
    %c0_19 = arith.constant 0 : index
    %28 = vector.load %arg8[%c0_18, %c0_19] : memref<128x128xbf16, #tpu.memory_space<vmem>>, vector<128x128xbf16>
    %cst_20 = arith.constant dense<0.000000e+00> : vector<32x128xf32>
    %29 = tpu.matmul %27, %28, %cst_20 {dimension_numbers = #tpu.dot_dimension_numbers<[1], [0], [0], [1], [0, 0, 1, 1], [], []>} : vector<32x128xbf16>, vector<128x128xbf16>, vector<32x128xf32> -> vector<32x128xf32>
    %c0_21 = arith.constant 0 : index
    %c0_22 = arith.constant 0 : index
    %30 = vector.load %arg9[%c0_21, %c0_22] : memref<1x128xf32, #tpu.memory_space<vmem>>, vector<1x128xf32>
    %31 = vector.broadcast %30 : vector<1x128xf32> to vector<32x128xf32>
    %32 = arith.addf %29, %31 : vector<32x128xf32>
    %cst_23 = arith.constant 0.000000e+00 : f32
    %33 = vector.broadcast %cst_23 : f32 to vector<32x128xf32>
    %34 = arith.subf %33, %32 : vector<32x128xf32>
    %35 = math.exp %34 : vector<32x128xf32>
    %cst_24 = arith.constant 1.000000e+00 : f32
    %36 = vector.broadcast %cst_24 : f32 to vector<32x128xf32>
    %37 = arith.addf %36, %35 : vector<32x128xf32>
    %38 = tpu.reciprocal %37 {approx = true} : vector<32x128xf32> -> vector<32x128xf32>
    %c0_25 = arith.constant 0 : index
    %c0_26 = arith.constant 0 : index
    %39 = vector.load %arg10[%c0_25, %c0_26] : memref<32x128xf32, #tpu.memory_space<vmem>>, vector<32x128xf32>
    tpu.vector_store %arg10[%c0_25, %c0_26], %38 {strides = array<i32>} : memref<32x128xf32, #tpu.memory_space<vmem>>, vector<32x128xf32>,
    return
  }
  func.func @transform_0(%arg0: i32) -> (i32, i32) {
    %c0_i32 = arith.constant 0 : i32
    %c0_i32_0 = arith.constant 0 : i32
    return %arg0, %c0_i32 : i32, i32
  }
  func.func @transform_1(%arg0: i32) -> (i32, i32) {
    %c0_i32 = arith.constant 0 : i32
    %c0_i32_0 = arith.constant 0 : i32
    %c0_i32_1 = arith.constant 0 : i32
    return %c0_i32, %c0_i32_0 : i32, i32
  }
  func.func @transform_2(%arg0: i32) -> (i32, i32) {
    %c0_i32 = arith.constant 0 : i32
    %c0_i32_0 = arith.constant 0 : i32
    %c0_i32_1 = arith.constant 0 : i32
    return %c0_i32, %c0_i32_0 : i32, i32
  }
  func.func @transform_3(%arg0: i32) -> (i32, i32) {
    %c0_i32 = arith.constant 0 : i32
    %c0_i32_0 = arith.constant 0 : i32
    %c0_i32_1 = arith.constant 0 : i32
    return %c0_i32, %c0_i32_0 : i32, i32
  }
  func.func @transform_4(%arg0: i32) -> (i32, i32) {
    %c0_i32 = arith.constant 0 : i32
    %c0_i32_0 = arith.constant 0 : i32
    %c0_i32_1 = arith.constant 0 : i32
    return %c0_i32, %c0_i32_0 : i32, i32
  }
  func.func @transform_5(%arg0: i32) -> (i32, i32) {
    %c0_i32 = arith.constant 0 : i32
    %c0_i32_0 = arith.constant 0 : i32
    %c0_i32_1 = arith.constant 0 : i32
    return %c0_i32, %c0_i32_0 : i32, i32
  }
  func.func @transform_6(%arg0: i32) -> (i32, i32) {
    %c0_i32 = arith.constant 0 : i32
    %c0_i32_0 = arith.constant 0 : i32
    %c0_i32_1 = arith.constant 0 : i32
    return %c0_i32, %c0_i32_0 : i32, i32
  }
  func.func @transform_7(%arg0: i32) -> (i32, i32) {
    %c0_i32 = arith.constant 0 : i32
    %c0_i32_0 = arith.constant 0 : i32
    %c0_i32_1 = arith.constant 0 : i32
    return %c0_i32, %c0_i32_0 : i32, i32
  }
  func.func @transform_8(%arg0: i32) -> (i32, i32) {
    %c0_i32 = arith.constant 0 : i32
    %c0_i32_0 = arith.constant 0 : i32
    %c0_i32_1 = arith.constant 0 : i32
    return %c0_i32, %c0_i32_0 : i32, i32
  }
  func.func @transform_9(%arg0: i32) -> (i32, i32) {
    %c0_i32 = arith.constant 0 : i32
    %c0_i32_0 = arith.constant 0 : i32
    return %arg0, %c0_i32 : i32, i32
  }
}

</mosaic_0001>

<llo_original>
// kernel: discriminator_forward.1
$region0: #{discriminator_forward.1}
  #allocation0 [shape = 'u32[]', space=smem, size = 0x4, offset = 0x4, fixed_abs, tag = 'smem constant byte address 0x4 - core index']
  #allocation1 [shape = 'u32[72,128]{1,0:T(1,128)}', space=vmem, size = 0x9000, scoped, tag = 'internal scratch']
  %s0 = inlined_call_operand.vmem [shape: bf16[64,896], index: 0, kind: input, shape index: {}]
  %s1 = inlined_call_operand.vmem [shape: bf16[896,512], index: 1, kind: input, shape index: {}]
  %s2 = inlined_call_operand.vmem [shape: f32[1,512], index: 2, kind: input, shape index: {}]
  %s3 = inlined_call_operand.vmem [shape: bf16[512,256], index: 3, kind: input, shape index: {}]
  %s4 = inlined_call_operand.vmem [shape: f32[1,256], index: 4, kind: input, shape index: {}]
  %s5 = inlined_call_operand.vmem [shape: bf16[256,128], index: 5, kind: input, shape index: {}]
  %s6 = inlined_call_operand.vmem [shape: f32[1,128], index: 6, kind: input, shape index: {}]
  %s7 = inlined_call_operand.vmem [shape: bf16[128,128], index: 7, kind: input, shape index: {}]
  %s8 = inlined_call_operand.vmem [shape: f32[1,128], index: 8, kind: input, shape index: {}]
  %s9 = inlined_call_operand.vmem [shape: f32[64,128], index: 9, kind: output, shape index: {}]
  %s10 = sld [smem:[#allocation0]]
  $region69: #{discriminator_forward.1} parent=0
    _
  %s12 = ssub.s32 1, %s10
  %s13 = scalar_select 0, %s12, %s10
  loop: start=0, step=1, limit=4
  $region2: #{discriminator_forward.1} parent=0 // loop_pre_header
    _
  $region3: #{discriminator_forward.1} parent=0 // loop_header
    %s15 = sphi 0, %s19
    %p16 = scmp.ge.s32.totalorder %s15, 4
    %s25 = sphi 0, %s27
    %s28 = sphi 0, %s25
    %s29 = sphi 0, %s28
    %s45 = sphi 0, %s29
    %s49 = sphi 0, %s49
    %s51 = sphi 0, %s49
    %s52 = sphi 0, %s51
    %s66 = sphi 0, %s52
    %s70 = sphi 0, %s70
    %s72 = sphi 0, %s70
    %s73 = sphi 0, %s72
    %s87 = sphi 0, %s73
    %s91 = sphi 0, %s91
    %s93 = sphi 0, %s91
    %s94 = sphi 0, %s93
    %s108 = sphi 0, %s94
    %s112 = sphi 0, %s112
    %s114 = sphi 0, %s112
    %s115 = sphi 0, %s114
    %s129 = sphi 0, %s115
    %s133 = sphi 0, %s133
    %s135 = sphi 0, %s133
    %s136 = sphi 0, %s135
    %s150 = sphi 0, %s136
    %s154 = sphi 0, %s154
    %s156 = sphi 0, %s154
    %s157 = sphi 0, %s156
    %s171 = sphi 0, %s157
    %s175 = sphi 0, %s175
    %s177 = sphi 0, %s175
    %s178 = sphi 0, %s177
    %s192 = sphi 0, %s178
    %s196 = sphi 0, %s196
    %s198 = sphi 0, %s196
    %s199 = sphi 0, %s198
    %s213 = sphi 0, %s199
    %s219 = sphi 0, %s221
    %s222 = sphi 0, %s219
    %s223 = sphi 0, %s222
    %s239 = sphi 0, %s223
  $region4: #{discriminator_forward.1} parent=0 // loop_header_branch
    %18 = sbr.rel (%p16) target = $region8
  $region5: #{discriminator_forward.1} parent=0 // loop_body
    %s20 = ssub.s32 %s15, 1
    %s21 = ssub.s32 %s15, 2
    %s22 = sadd.s32 %s15, 1
    %s23 = ssub.s32 %s15, %s22
    %p24 = scmp.eq.s32.totalorder %s23, 0
    %s26 = sadd.s32 %s25, 1
    %s27 = scalar_select %p24, %s25, %s26
    %p30 = pneg %p24
    %p31 = scmp.eq.s32.totalorder %s15, 1
    %p32 = por %p30, %p31
    %p33 = scmp.ne.s32.totalorder %s25, %s28
    %p34 = scmp.eq.s32.totalorder %s15, 0
    %p35 = por %p33, %p34
    %p36 = scmp.ne.s32.totalorder %s25, %s28
    %p37 = scmp.eq.s32.totalorder %s20, 1
    %p38 = por %p36, %p37
    %p39 = scmp.ne.s32.totalorder %s28, %s29
    %p40 = scmp.eq.s32.totalorder %s20, 0
    %p41 = por %p39, %p40
    %p42 = scmp.ne.s32.totalorder %s28, %s29
    %p43 = scmp.eq.s32.totalorder %s21, 1
    %p44 = por %p42, %p43
    %p46 = scmp.ne.s32.totalorder %s29, %s45
    %p47 = scmp.eq.s32.totalorder %s21, 0
    %p48 = por %p46, %p47
    %s50 = sadd.s32 %s49, 1
    %p53 = scmp.eq.s32.totalorder %s15, 1
    %p54 = scmp.ne.s32.totalorder %s49, %s51
    %p55 = scmp.eq.s32.totalorder %s15, 0
    %p56 = por %p54, %p55
    %p57 = scmp.ne.s32.totalorder %s49, %s51
    %p58 = scmp.eq.s32.totalorder %s20, 1
    %p59 = por %p57, %p58
    %p60 = scmp.ne.s32.totalorder %s51, %s52
    %p61 = scmp.eq.s32.totalorder %s20, 0
    %p62 = por %p60, %p61
    %p63 = scmp.ne.s32.totalorder %s51, %s52
    %p64 = scmp.eq.s32.totalorder %s21, 1
    %p65 = por %p63, %p64
    %p67 = scmp.ne.s32.totalorder %s52, %s66
    %p68 = scmp.eq.s32.totalorder %s21, 0
    %p69 = por %p67, %p68
    %s71 = sadd.s32 %s70, 1
    %p74 = scmp.eq.s32.totalorder %s15, 1
    %p75 = scmp.ne.s32.totalorder %s70, %s72
    %p76 = scmp.eq.s32.totalorder %s15, 0
    %p77 = por %p75, %p76
    %p78 = scmp.ne.s32.totalorder %s70, %s72
    %p79 = scmp.eq.s32.totalorder %s20, 1
    %p80 = por %p78, %p79
    %p81 = scmp.ne.s32.totalorder %s72, %s73
    %p82 = scmp.eq.s32.totalorder %s20, 0
    %p83 = por %p81, %p82
    %p84 = scmp.ne.s32.totalorder %s72, %s73
    %p85 = scmp.eq.s32.totalorder %s21, 1
    %p86 = por %p84, %p85
    %p88 = scmp.ne.s32.totalorder %s73, %s87
    %p89 = scmp.eq.s32.totalorder %s21, 0
    %p90 = por %p88, %p89
    %s92 = sadd.s32 %s91, 1
    %p95 = scmp.eq.s32.totalorder %s15, 1
    %p96 = scmp.ne.s32.totalorder %s91, %s93
    %p97 = scmp.eq.s32.totalorder %s15, 0
    %p98 = por %p96, %p97
    %p99 = scmp.ne.s32.totalorder %s91, %s93
    %p100 = scmp.eq.s32.totalorder %s20, 1
    %p101 = por %p99, %p100
    %p102 = scmp.ne.s32.totalorder %s93, %s94
    %p103 = scmp.eq.s32.totalorder %s20, 0
    %p104 = por %p102, %p103
    %p105 = scmp.ne.s32.totalorder %s93, %s94
    %p106 = scmp.eq.s32.totalorder %s21, 1
    %p107 = por %p105, %p106
    %p109 = scmp.ne.s32.totalorder %s94, %s108
    %p110 = scmp.eq.s32.totalorder %s21, 0
    %p111 = por %p109, %p110
    %s113 = sadd.s32 %s112, 1
    %p116 = scmp.eq.s32.totalorder %s15, 1
    %p117 = scmp.ne.s32.totalorder %s112, %s114
    %p118 = scmp.eq.s32.totalorder %s15, 0
    %p119 = por %p117, %p118
    %p120 = scmp.ne.s32.totalorder %s112, %s114
    %p121 = scmp.eq.s32.totalorder %s20, 1
    %p122 = por %p120, %p121
    %p123 = scmp.ne.s32.totalorder %s114, %s115
    %p124 = scmp.eq.s32.totalorder %s20, 0
    %p125 = por %p123, %p124
    %p126 = scmp.ne.s32.totalorder %s114, %s115
    %p127 = scmp.eq.s32.totalorder %s21, 1
    %p128 = por %p126, %p127
    %p130 = scmp.ne.s32.totalorder %s115, %s129
    %p131 = scmp.eq.s32.totalorder %s21, 0
    %p132 = por %p130, %p131
    %s134 = sadd.s32 %s133, 1
    %p137 = scmp.eq.s32.totalorder %s15, 1
    %p138 = scmp.ne.s32.totalorder %s133, %s135
    %p139 = scmp.eq.s32.totalorder %s15, 0
    %p140 = por %p138, %p139
    %p141 = scmp.ne.s32.totalorder %s133, %s135
    %p142 = scmp.eq.s32.totalorder %s20, 1
    %p143 = por %p141, %p142
    %p144 = scmp.ne.s32.totalorder %s135, %s136
    %p145 = scmp.eq.s32.totalorder %s20, 0
    %p146 = por %p144, %p145
    %p147 = scmp.ne.s32.totalorder %s135, %s136
    %p148 = scmp.eq.s32.totalorder %s21, 1
    %p149 = por %p147, %p148
    %p151 = scmp.ne.s32.totalorder %s136, %s150
    %p152 = scmp.eq.s32.totalorder %s21, 0
    %p153 = por %p151, %p152
    %s155 = sadd.s32 %s154, 1
    %p158 = scmp.eq.s32.totalorder %s15, 1
    %p159 = scmp.ne.s32.totalorder %s154, %s156
    %p160 = scmp.eq.s32.totalorder %s15, 0
    %p161 = por %p159, %p160
    %p162 = scmp.ne.s32.totalorder %s154, %s156
    %p163 = scmp.eq.s32.totalorder %s20, 1
    %p164 = por %p162, %p163
    %p165 = scmp.ne.s32.totalorder %s156, %s157
    %p166 = scmp.eq.s32.totalorder %s20, 0
    %p167 = por %p165, %p166
    %p168 = scmp.ne.s32.totalorder %s156, %s157
    %p169 = scmp.eq.s32.totalorder %s21, 1
    %p170 = por %p168, %p169
    %p172 = scmp.ne.s32.totalorder %s157, %s171
    %p173 = scmp.eq.s32.totalorder %s21, 0
    %p174 = por %p172, %p173
    %s176 = sadd.s32 %s175, 1
    %p179 = scmp.eq.s32.totalorder %s15, 1
    %p180 = scmp.ne.s32.totalorder %s175, %s177
    %p181 = scmp.eq.s32.totalorder %s15, 0
    %p182 = por %p180, %p181
    %p183 = scmp.ne.s32.totalorder %s175, %s177
    %p184 = scmp.eq.s32.totalorder %s20, 1
    %p185 = por %p183, %p184
    %p186 = scmp.ne.s32.totalorder %s177, %s178
    %p187 = scmp.eq.s32.totalorder %s20, 0
    %p188 = por %p186, %p187
    %p189 = scmp.ne.s32.totalorder %s177, %s178
    %p190 = scmp.eq.s32.totalorder %s21, 1
    %p191 = por %p189, %p190
    %p193 = scmp.ne.s32.totalorder %s178, %s192
    %p194 = scmp.eq.s32.totalorder %s21, 0
    %p195 = por %p193, %p194
    %s197 = sadd.s32 %s196, 1
    %p200 = scmp.eq.s32.totalorder %s15, 1
    %p201 = scmp.ne.s32.totalorder %s196, %s198
    %p202 = scmp.eq.s32.totalorder %s15, 0
    %p203 = por %p201, %p202
    %p204 = scmp.ne.s32.totalorder %s196, %s198
    %p205 = scmp.eq.s32.totalorder %s20, 1
    %p206 = por %p204, %p205
    %p207 = scmp.ne.s32.totalorder %s198, %s199
    %p208 = scmp.eq.s32.totalorder %s20, 0
    %p209 = por %p207, %p208
    %p210 = scmp.ne.s32.totalorder %s198, %s199
    %p211 = scmp.eq.s32.totalorder %s21, 1
    %p212 = por %p210, %p211
    %p214 = scmp.ne.s32.totalorder %s199, %s213
    %p215 = scmp.eq.s32.totalorder %s21, 0
    %p216 = por %p214, %p215
    %s217 = ssub.s32 %s15, %s22
    %p218 = scmp.eq.s32.totalorder %s217, 0
    %s220 = sadd.s32 %s219, 1
    %s221 = scalar_select %p218, %s219, %s220
    %p224 = pneg %p218
    %p225 = scmp.eq.s32.totalorder %s15, 1
    %p226 = por %p224, %p225
    %p227 = scmp.ne.s32.totalorder %s219, %s222
    %p228 = scmp.eq.s32.totalorder %s15, 0
    %p229 = por %p227, %p228
    %p230 = scmp.ne.s32.totalorder %s219, %s222
    %p231 = scmp.eq.s32.totalorder %s20, 1
    %p232 = por %p230, %p231
    %p233 = scmp.ne.s32.totalorder %s222, %s223
    %p234 = scmp.eq.s32.totalorder %s20, 0
    %p235 = por %p233, %p234
    %p236 = scmp.ne.s32.totalorder %s222, %s223
    %p237 = scmp.eq.s32.totalorder %s21, 1
    %p238 = por %p236, %p237
    %p240 = scmp.ne.s32.totalorder %s223, %s239
    %p241 = scmp.eq.s32.totalorder %s21, 0
    %p242 = por %p240, %p241
    %p243 = scmp.le.s32.totalorder 1, %s15
    %p244 = scmp.lt.s32.totalorder %s15, 3
    %p245 = pnand %p243, %p244
    %p246 = pneg %p245
    // Predicated region
    $region9: #{discriminator_forward.1} parent=5 // pred_check
      _
    $region10: #{discriminator_forward.1} parent=5 // pred_check_branch
      %248 = sbr.rel (%p245) target = $region12
    $region11: #{discriminator_forward.1} parent=5 // pred_region
      %s249 = ssub.s32 %s15, 1
      // Predicated region
      $region13: #{discriminator_forward.1} parent=11 // pred_check
        %p250 = pneg %p62
      $region14: #{discriminator_forward.1} parent=11 // pred_check_branch
        %252 = sbr.rel (%p250) target = $region16
      $region15: #{discriminator_forward.1} parent=11 // pred_region
        _
      $region16: #{discriminator_forward.1} parent=11 // pred_fallthru
        _
      // Predicated region
      $region17: #{discriminator_forward.1} parent=11 // pred_check
        %p253 = pneg %p83
      $region18: #{discriminator_forward.1} parent=11 // pred_check_branch
        %255 = sbr.rel (%p253) target = $region20
      $region19: #{discriminator_forward.1} parent=11 // pred_region
        _
      $region20: #{discriminator_forward.1} parent=11 // pred_fallthru
        _
      // Predicated region
      $region21: #{discriminator_forward.1} parent=11 // pred_check
        %p256 = pneg %p104
      $region22: #{discriminator_forward.1} parent=11 // pred_check_branch
        %258 = sbr.rel (%p256) target = $region24
      $region23: #{discriminator_forward.1} parent=11 // pred_region
        _
      $region24: #{discriminator_forward.1} parent=11 // pred_fallthru
        _
      // Predicated region
      $region25: #{discriminator_forward.1} parent=11 // pred_check
        %p259 = pneg %p125
      $region26: #{discriminator_forward.1} parent=11 // pred_check_branch
        %261 = sbr.rel (%p259) target = $region28
      $region27: #{discriminator_forward.1} parent=11 // pred_region
        _
      $region28: #{discriminator_forward.1} parent=11 // pred_fallthru
        _
      // Predicated region
      $region29: #{discriminator_forward.1} parent=11 // pred_check
        %p262 = pneg %p146
      $region30: #{discriminator_forward.1} parent=11 // pred_check_branch
        %264 = sbr.rel (%p262) target = $region32
      $region31: #{discriminator_forward.1} parent=11 // pred_region
        _
      $region32: #{discriminator_forward.1} parent=11 // pred_fallthru
        _
      // Predicated region
      $region33: #{discriminator_forward.1} parent=11 // pred_check
        %p265 = pneg %p167
      $region34: #{discriminator_forward.1} parent=11 // pred_check_branch
        %267 = sbr.rel (%p265) target = $region36
      $region35: #{discriminator_forward.1} parent=11 // pred_region
        _
      $region36: #{discriminator_forward.1} parent=11 // pred_fallthru
        _
      // Predicated region
      $region37: #{discriminator_forward.1} parent=11 // pred_check
        %p268 = pneg %p188
      $region38: #{discriminator_forward.1} parent=11 // pred_check_branch
        %270 = sbr.rel (%p268) target = $region40
      $region39: #{discriminator_forward.1} parent=11 // pred_region
        _
      $region40: #{discriminator_forward.1} parent=11 // pred_fallthru
        _
      // Predicated region
      $region41: #{discriminator_forward.1} parent=11 // pred_check
        %p271 = pneg %p209
      $region42: #{discriminator_forward.1} parent=11 // pred_check_branch
        %273 = sbr.rel (%p271) target = $region44
      $region43: #{discriminator_forward.1} parent=11 // pred_region
        _
      $region44: #{discriminator_forward.1} parent=11 // pred_fallthru
        _
    $region12: #{discriminator_forward.1} parent=5 // pred_fallthru
      _
    %p274 = scmp.lt.s32.totalorder %s15, 2
    // Predicated region
    $region45: #{discriminator_forward.1} parent=5 // pred_check
      %p275 = pneg %p274
    $region46: #{discriminator_forward.1} parent=5 // pred_check_branch
      %277 = sbr.rel (%p275) target = $region48
    $region47: #{discriminator_forward.1} parent=5 // pred_region
      // Predicated region
      $region49: #{discriminator_forward.1} parent=47 // pred_check
        %p278 = pneg %p35
      $region50: #{discriminator_forward.1} parent=47 // pred_check_branch
        %280 = sbr.rel (%p278) target = $region52
      $region51: #{discriminator_forward.1} parent=47 // pred_region
        %s281 = smul.u32 4, %s15
        %p282 = scmp.lt.s32.totalorder %s281, 7
        %s283 = scalar_select %p282, %s281, 7
        %s284 = smul.addr %s283, 7
        %s285 = smul.addr %s284, 4
        %s286 = scalar_lea.vmem %s0, %s285
        %s287 = smul.u32 4, %s15
      $region52: #{discriminator_forward.1} parent=47 // pred_fallthru
        _
    $region48: #{discriminator_forward.1} parent=5 // pred_fallthru
      _
    %p288 = scmp.le.s32.totalorder 1, %s15
    %p289 = scmp.lt.s32.totalorder %s15, 3
    %p290 = pnand %p288, %p289
    %p291 = pneg %p290
    // Predicated region
    $region53: #{discriminator_forward.1} parent=5 // pred_check
      _
    $region54: #{discriminator_forward.1} parent=5 // pred_check_branch
      %293 = sbr.rel (%p290) target = $region56
    $region55: #{discriminator_forward.1} parent=5 // pred_region
      %s294 = ssub.s32 %s15, 1
      %s295 = smul.u32 4, %s20
      %p296 = scmp.lt.s32.totalorder %s295, 7
      %s297 = scalar_select %p296, %s295, 7
      %s298 = smul.addr %s297, 7
      %s299 = smul.addr %s298, 4
      %s300 = scalar_lea.vmem %s0, %s299
      %p301 = pneg %p41
      %p302 = pneg %p38
      %p303 = pneg %p62
      %p304 = pneg %p59
      %p305 = pneg %p83
      %p306 = pneg %p80
      %p307 = pneg %p104
      %p308 = pneg %p101
      %p309 = pneg %p125
      %p310 = pneg %p122
      %p311 = pneg %p146
      %p312 = pneg %p143
      %p313 = pneg %p167
      %p314 = pneg %p164
      %p315 = pneg %p188
      %p316 = pneg %p185
      %p317 = pneg %p209
      %p318 = pneg %p206
      %p319 = pneg %p235
      %p320 = pneg %p232
      %s321 = smul.u32 4, %s20
      %p322 = scmp.lt.s32.totalorder %s321, 7
      %s323 = scalar_select %p322, %s321, 7
      %s324 = smul.addr %s323, 8
      %s325 = scalar_lea.vmem %s9, %s324
      %s326 = smul.u32 4, %s20
      %p327 = scmp.lt.s32.totalorder %s326, 7
      %s328 = scalar_select %p327, %s326, 7
      %s329 = smul.addr %s328, 7
      %s330 = smul.addr %s329, 4
      %s331 = scalar_lea.vmem %s0, %s330
      %s332 = smul.u32 4, %s20
      %s333 = smul.u32 4, %s20
      %p334 = scmp.lt.s32.totalorder %s333, 7
      %s335 = scalar_select %p334, %s333, 7
      %s336 = smul.addr %s335, 8
      %s337 = scalar_lea.vmem %s9, %s336
      %s338 = smul.u32 4, %s20
      %v339 = vld [vmem:[%s331] sm:$0xff]
      %v340 = vld [vmem:[%s331 + $0x8] sm:$0xff]
      %v341 = vld [vmem:[%s331 + $0x10] sm:$0xff]
      %v342 = vld [vmem:[%s331 + $0x18] sm:$0xf]
      %v343 = vld [vmem:[%s331 + $0x1c] sm:$0xff]
      %v344 = vld [vmem:[%s331 + $0x24] sm:$0xff]
      %v345 = vld [vmem:[%s331 + $0x2c] sm:$0xff]
      %v346 = vld [vmem:[%s331 + $0x34] sm:$0xf]
      %v347 = vld [vmem:[%s331 + $0x38] sm:$0xff]
      %v348 = vld [vmem:[%s331 + $0x40] sm:$0xff]
      %v349 = vld [vmem:[%s331 + $0x48] sm:$0xff]
      %v350 = vld [vmem:[%s331 + $0x50] sm:$0xf]
      %v351 = vld [vmem:[%s331 + $0x54] sm:$0xff]
      %v352 = vld [vmem:[%s331 + $0x5c] sm:$0xff]
      %v353 = vld [vmem:[%s331 + $0x64] sm:$0xff]
      %v354 = vld [vmem:[%s331 + $0x6c] sm:$0xf]
      %v355 = vld [vmem:[%s1] sm:$0xff]
      %v356 = vld [vmem:[%s1 + $0x8] sm:$0xff]
      %v357 = vld [vmem:[%s1 + $0x10] sm:$0xff]
      %v358 = vld [vmem:[%s1 + $0x18] sm:$0xff]
      %v359 = vld [vmem:[%s1 + $0x20] sm:$0xff]
      %v360 = vld [vmem:[%s1 + $0x28] sm:$0xff]
      %v361 = vld [vmem:[%s1 + $0x30] sm:$0xff]
      %v362 = vld [vmem:[%s1 + $0x38] sm:$0xff]
      %v363 = vld [vmem:[%s1 + $0x40] sm:$0xff]
      %v364 = vld [vmem:[%s1 + $0x48] sm:$0xff]
      %v365 = vld [vmem:[%s1 + $0x50] sm:$0xff]
      %v366 = vld [vmem:[%s1 + $0x58] sm:$0xff]
      %v367 = vld [vmem:[%s1 + $0x60] sm:$0xff]
      %v368 = vld [vmem:[%s1 + $0x68] sm:$0xff]
      %v369 = vld [vmem:[%s1 + $0x70] sm:$0xff]
      %v370 = vld [vmem:[%s1 + $0x78] sm:$0xff]
      %v371 = vld [vmem:[%s1 + $0x80] sm:$0xff]
      %v372 = vld [vmem:[%s1 + $0x88] sm:$0xff]
      %v373 = vld [vmem:[%s1 + $0x90] sm:$0xff]
      %v374 = vld [vmem:[%s1 + $0x98] sm:$0xff]
      %v375 = vld [vmem:[%s1 + $0xa0] sm:$0xff]
      %v376 = vld [vmem:[%s1 + $0xa8] sm:$0xff]
      %v377 = vld [vmem:[%s1 + $0xb0] sm:$0xff]
      %v378 = vld [vmem:[%s1 + $0xb8] sm:$0xff]
      %v379 = vld [vmem:[%s1 + $0xc0] sm:$0xff]
      %v380 = vld [vmem:[%s1 + $0xc8] sm:$0xff]
      %v381 = vld [vmem:[%s1 + $0xd0] sm:$0xff]
      %v382 = vld [vmem:[%s1 + $0xd8] sm:$0xff]
      %v383 = vld [vmem:[%s1 + $0xe0] sm:$0xff]
      %v384 = vld [vmem:[%s1 + $0xe8] sm:$0xff]
      %v385 = vld [vmem:[%s1 + $0xf0] sm:$0xff]
      %v386 = vld [vmem:[%s1 + $0xf8] sm:$0xff]
      %v387 = vld [vmem:[%s1 + $0x100] sm:$0xff]
      %v388 = vld [vmem:[%s1 + $0x108] sm:$0xff]
      %v389 = vld [vmem:[%s1 + $0x110] sm:$0xff]
      %v390 = vld [vmem:[%s1 + $0x118] sm:$0xff]
      %v391 = vld [vmem:[%s1 + $0x120] sm:$0xff]
      %v392 = vld [vmem:[%s1 + $0x128] sm:$0xff]
      %v393 = vld [vmem:[%s1 + $0x130] sm:$0xff]
      %v394 = vld [vmem:[%s1 + $0x138] sm:$0xff]
      %v395 = vld [vmem:[%s1 + $0x140] sm:$0xff]
      %v396 = vld [vmem:[%s1 + $0x148] sm:$0xff]
      %v397 = vld [vmem:[%s1 + $0x150] sm:$0xff]
      %v398 = vld [vmem:[%s1 + $0x158] sm:$0xff]
      %v399 = vld [vmem:[%s1 + $0x160] sm:$0xff]
      %v400 = vld [vmem:[%s1 + $0x168] sm:$0xff]
      %v401 = vld [vmem:[%s1 + $0x170] sm:$0xff]
      %v402 = vld [vmem:[%s1 + $0x178] sm:$0xff]
      %v403 = vld [vmem:[%s1 + $0x180] sm:$0xff]
      %v404 = vld [vmem:[%s1 + $0x188] sm:$0xff]
      %v405 = vld [vmem:[%s1 + $0x190] sm:$0xff]
      %v406 = vld [vmem:[%s1 + $0x198] sm:$0xff]
      %v407 = vld [vmem:[%s1 + $0x1a0] sm:$0xff]
      %v408 = vld [vmem:[%s1 + $0x1a8] sm:$0xff]
      %v409 = vld [vmem:[%s1 + $0x1b0] sm:$0xff]
      %v410 = vld [vmem:[%s1 + $0x1b8] sm:$0xff]
      %v411 = vld [vmem:[%s1 + $0x1c0] sm:$0xff]
      %v412 = vld [vmem:[%s1 + $0x1c8] sm:$0xff]
      %v413 = vld [vmem:[%s1 + $0x1d0] sm:$0xff]
      %v414 = vld [vmem:[%s1 + $0x1d8] sm:$0xff]
      %v415 = vld [vmem:[%s1 + $0x1e0] sm:$0xff]
      %v416 = vld [vmem:[%s1 + $0x1e8] sm:$0xff]
      %v417 = vld [vmem:[%s1 + $0x1f0] sm:$0xff]
      %v418 = vld [vmem:[%s1 + $0x1f8] sm:$0xff]
      %v419 = vld [vmem:[%s1 + $0x200] sm:$0xff]
      %v420 = vld [vmem:[%s1 + $0x208] sm:$0xff]
      %v421 = vld [vmem:[%s1 + $0x210] sm:$0xff]
      %v422 = vld [vmem:[%s1 + $0x218] sm:$0xff]
      %v423 = vld [vmem:[%s1 + $0x220] sm:$0xff]
      %v424 = vld [vmem:[%s1 + $0x228] sm:$0xff]
      %v425 = vld [vmem:[%s1 + $0x230] sm:$0xff]
      %v426 = vld [vmem:[%s1 + $0x238] sm:$0xff]
      %v427 = vld [vmem:[%s1 + $0x240] sm:$0xff]
      %v428 = vld [vmem:[%s1 + $0x248] sm:$0xff]
      %v429 = vld [vmem:[%s1 + $0x250] sm:$0xff]
      %v430 = vld [vmem:[%s1 + $0x258] sm:$0xff]
      %v431 = vld [vmem:[%s1 + $0x260] sm:$0xff]
      %v432 = vld [vmem:[%s1 + $0x268] sm:$0xff]
      %v433 = vld [vmem:[%s1 + $0x270] sm:$0xff]
      %v434 = vld [vmem:[%s1 + $0x278] sm:$0xff]
      %v435 = vld [vmem:[%s1 + $0x280] sm:$0xff]
      %v436 = vld [vmem:[%s1 + $0x288] sm:$0xff]
      %v437 = vld [vmem:[%s1 + $0x290] sm:$0xff]
      %v438 = vld [vmem:[%s1 + $0x298] sm:$0xff]
      %v439 = vld [vmem:[%s1 + $0x2a0] sm:$0xff]
      %v440 = vld [vmem:[%s1 + $0x2a8] sm:$0xff]
      %v441 = vld [vmem:[%s1 + $0x2b0] sm:$0xff]
      %v442 = vld [vmem:[%s1 + $0x2b8] sm:$0xff]
      %v443 = vld [vmem:[%s1 + $0x2c0] sm:$0xff]
      %v444 = vld [vmem:[%s1 + $0x2c8] sm:$0xff]
      %v445 = vld [vmem:[%s1 + $0x2d0] sm:$0xff]
      %v446 = vld [vmem:[%s1 + $0x2d8] sm:$0xff]
      %v447 = vld [vmem:[%s1 + $0x2e0] sm:$0xff]
      %v448 = vld [vmem:[%s1 + $0x2e8] sm:$0xff]
      %v449 = vld [vmem:[%s1 + $0x2f0] sm:$0xff]
      %v450 = vld [vmem:[%s1 + $0x2f8] sm:$0xff]
      %v451 = vld [vmem:[%s1 + $0x300] sm:$0xff]
      %v452 = vld [vmem:[%s1 + $0x308] sm:$0xff]
      %v453 = vld [vmem:[%s1 + $0x310] sm:$0xff]
      %v454 = vld [vmem:[%s1 + $0x318] sm:$0xff]
      %v455 = vld [vmem:[%s1 + $0x320] sm:$0xff]
      %v456 = vld [vmem:[%s1 + $0x328] sm:$0xff]
      %v457 = vld [vmem:[%s1 + $0x330] sm:$0xff]
      %v458 = vld [vmem:[%s1 + $0x338] sm:$0xff]
      %v459 = vld [vmem:[%s1 + $0x340] sm:$0xff]
      %v460 = vld [vmem:[%s1 + $0x348] sm:$0xff]
      %v461 = vld [vmem:[%s1 + $0x350] sm:$0xff]
      %v462 = vld [vmem:[%s1 + $0x358] sm:$0xff]
      %v463 = vld [vmem:[%s1 + $0x360] sm:$0xff]
      %v464 = vld [vmem:[%s1 + $0x368] sm:$0xff]
      %v465 = vld [vmem:[%s1 + $0x370] sm:$0xff]
      %v466 = vld [vmem:[%s1 + $0x378] sm:$0xff]
      %v467 = vld [vmem:[%s1 + $0x380] sm:$0xff]
      %v468 = vld [vmem:[%s1 + $0x388] sm:$0xff]
      %v469 = vld [vmem:[%s1 + $0x390] sm:$0xff]
      %v470 = vld [vmem:[%s1 + $0x398] sm:$0xff]
      %v471 = vld [vmem:[%s1 + $0x3a0] sm:$0xff]
      %v472 = vld [vmem:[%s1 + $0x3a8] sm:$0xff]
      %v473 = vld [vmem:[%s1 + $0x3b0] sm:$0xff]
      %v474 = vld [vmem:[%s1 + $0x3b8] sm:$0xff]
      %v475 = vld [vmem:[%s1 + $0x3c0] sm:$0xff]
      %v476 = vld [vmem:[%s1 + $0x3c8] sm:$0xff]
      %v477 = vld [vmem:[%s1 + $0x3d0] sm:$0xff]
      %v478 = vld [vmem:[%s1 + $0x3d8] sm:$0xff]
      %v479 = vld [vmem:[%s1 + $0x3e0] sm:$0xff]
      %v480 = vld [vmem:[%s1 + $0x3e8] sm:$0xff]
      %v481 = vld [vmem:[%s1 + $0x3f0] sm:$0xff]
      %v482 = vld [vmem:[%s1 + $0x3f8] sm:$0xff]
      %v483 = vld [vmem:[%s1 + $0x400] sm:$0xff]
      %v484 = vld [vmem:[%s1 + $0x408] sm:$0xff]
      %v485 = vld [vmem:[%s1 + $0x410] sm:$0xff]
      %v486 = vld [vmem:[%s1 + $0x418] sm:$0xff]
      %v487 = vld [vmem:[%s1 + $0x420] sm:$0xff]
      %v488 = vld [vmem:[%s1 + $0x428] sm:$0xff]
      %v489 = vld [vmem:[%s1 + $0x430] sm:$0xff]
      %v490 = vld [vmem:[%s1 + $0x438] sm:$0xff]
      %v491 = vld [vmem:[%s1 + $0x440] sm:$0xff]
      %v492 = vld [vmem:[%s1 + $0x448] sm:$0xff]
      %v493 = vld [vmem:[%s1 + $0x450] sm:$0xff]
      %v494 = vld [vmem:[%s1 + $0x458] sm:$0xff]
      %v495 = vld [vmem:[%s1 + $0x460] sm:$0xff]
      %v496 = vld [vmem:[%s1 + $0x468] sm:$0xff]
      %v497 = vld [vmem:[%s1 + $0x470] sm:$0xff]
      %v498 = vld [vmem:[%s1 + $0x478] sm:$0xff]
      %v499 = vld [vmem:[%s1 + $0x480] sm:$0xff]
      %v500 = vld [vmem:[%s1 + $0x488] sm:$0xff]
      %v501 = vld [vmem:[%s1 + $0x490] sm:$0xff]
      %v502 = vld [vmem:[%s1 + $0x498] sm:$0xff]
      %v503 = vld [vmem:[%s1 + $0x4a0] sm:$0xff]
      %v504 = vld [vmem:[%s1 + $0x4a8] sm:$0xff]
      %v505 = vld [vmem:[%s1 + $0x4b0] sm:$0xff]
      %v506 = vld [vmem:[%s1 + $0x4b8] sm:$0xff]
      %v507 = vld [vmem:[%s1 + $0x4c0] sm:$0xff]
      %v508 = vld [vmem:[%s1 + $0x4c8] sm:$0xff]
      %v509 = vld [vmem:[%s1 + $0x4d0] sm:$0xff]
      %v510 = vld [vmem:[%s1 + $0x4d8] sm:$0xff]
      %v511 = vld [vmem:[%s1 + $0x4e0] sm:$0xff]
      %v512 = vld [vmem:[%s1 + $0x4e8] sm:$0xff]
      %v513 = vld [vmem:[%s1 + $0x4f0] sm:$0xff]
      %v514 = vld [vmem:[%s1 + $0x4f8] sm:$0xff]
      %v515 = vld [vmem:[%s1 + $0x500] sm:$0xff]
      %v516 = vld [vmem:[%s1 + $0x508] sm:$0xff]
      %v517 = vld [vmem:[%s1 + $0x510] sm:$0xff]
      %v518 = vld [vmem:[%s1 + $0x518] sm:$0xff]
      %v519 = vld [vmem:[%s1 + $0x520] sm:$0xff]
      %v520 = vld [vmem:[%s1 + $0x528] sm:$0xff]
      %v521 = vld [vmem:[%s1 + $0x530] sm:$0xff]
      %v522 = vld [vmem:[%s1 + $0x538] sm:$0xff]
      %v523 = vld [vmem:[%s1 + $0x540] sm:$0xff]
      %v524 = vld [vmem:[%s1 + $0x548] sm:$0xff]
      %v525 = vld [vmem:[%s1 + $0x550] sm:$0xff]
      %v526 = vld [vmem:[%s1 + $0x558] sm:$0xff]
      %v527 = vld [vmem:[%s1 + $0x560] sm:$0xff]
      %v528 = vld [vmem:[%s1 + $0x568] sm:$0xff]
      %v529 = vld [vmem:[%s1 + $0x570] sm:$0xff]
      %v530 = vld [vmem:[%s1 + $0x578] sm:$0xff]
      %v531 = vld [vmem:[%s1 + $0x580] sm:$0xff]
      %v532 = vld [vmem:[%s1 + $0x588] sm:$0xff]
      %v533 = vld [vmem:[%s1 + $0x590] sm:$0xff]
      %v534 = vld [vmem:[%s1 + $0x598] sm:$0xff]
      %v535 = vld [vmem:[%s1 + $0x5a0] sm:$0xff]
      %v536 = vld [vmem:[%s1 + $0x5a8] sm:$0xff]
      %v537 = vld [vmem:[%s1 + $0x5b0] sm:$0xff]
      %v538 = vld [vmem:[%s1 + $0x5b8] sm:$0xff]
      %v539 = vld [vmem:[%s1 + $0x5c0] sm:$0xff]
      %v540 = vld [vmem:[%s1 + $0x5c8] sm:$0xff]
      %v541 = vld [vmem:[%s1 + $0x5d0] sm:$0xff]
      %v542 = vld [vmem:[%s1 + $0x5d8] sm:$0xff]
      %v543 = vld [vmem:[%s1 + $0x5e0] sm:$0xff]
      %v544 = vld [vmem:[%s1 + $0x5e8] sm:$0xff]
      %v545 = vld [vmem:[%s1 + $0x5f0] sm:$0xff]
      %v546 = vld [vmem:[%s1 + $0x5f8] sm:$0xff]
      %v547 = vld [vmem:[%s1 + $0x600] sm:$0xff]
      %v548 = vld [vmem:[%s1 + $0x608] sm:$0xff]
      %v549 = vld [vmem:[%s1 + $0x610] sm:$0xff]
      %v550 = vld [vmem:[%s1 + $0x618] sm:$0xff]
      %v551 = vld [vmem:[%s1 + $0x620] sm:$0xff]
      %v552 = vld [vmem:[%s1 + $0x628] sm:$0xff]
      %v553 = vld [vmem:[%s1 + $0x630] sm:$0xff]
      %v554 = vld [vmem:[%s1 + $0x638] sm:$0xff]
      %v555 = vld [vmem:[%s1 + $0x640] sm:$0xff]
      %v556 = vld [vmem:[%s1 + $0x648] sm:$0xff]
      %v557 = vld [vmem:[%s1 + $0x650] sm:$0xff]
      %v558 = vld [vmem:[%s1 + $0x658] sm:$0xff]
      %v559 = vld [vmem:[%s1 + $0x660] sm:$0xff]
      %v560 = vld [vmem:[%s1 + $0x668] sm:$0xff]
      %v561 = vld [vmem:[%s1 + $0x670] sm:$0xff]
      %v562 = vld [vmem:[%s1 + $0x678] sm:$0xff]
      %v563 = vld [vmem:[%s1 + $0x680] sm:$0xff]
      %v564 = vld [vmem:[%s1 + $0x688] sm:$0xff]
      %v565 = vld [vmem:[%s1 + $0x690] sm:$0xff]
      %v566 = vld [vmem:[%s1 + $0x698] sm:$0xff]
      %v567 = vld [vmem:[%s1 + $0x6a0] sm:$0xff]
      %v568 = vld [vmem:[%s1 + $0x6a8] sm:$0xff]
      %v569 = vld [vmem:[%s1 + $0x6b0] sm:$0xff]
      %v570 = vld [vmem:[%s1 + $0x6b8] sm:$0xff]
      %v571 = vld [vmem:[%s1 + $0x6c0] sm:$0xff]
      %v572 = vld [vmem:[%s1 + $0x6c8] sm:$0xff]
      %v573 = vld [vmem:[%s1 + $0x6d0] sm:$0xff]
      %v574 = vld [vmem:[%s1 + $0x6d8] sm:$0xff]
      %v575 = vld [vmem:[%s1 + $0x6e0] sm:$0xff]
      %v576 = vld [vmem:[%s1 + $0x6e8] sm:$0xff]
      %v577 = vld [vmem:[%s1 + $0x6f0] sm:$0xff]
      %v578 = vld [vmem:[%s1 + $0x6f8] sm:$0xff]
      %v579 = vld [vmem:[%s2] sm:$0xf]
      %v581 = vperm.slane %v579, 0
      %v582 = vperm.slane %v579, 1
      %v583 = vperm.slane %v579, 2
      %v584 = vperm.slane %v579, 3
      %v605 = vunpack.c.l.b16 %v339
      %v606 = vunpack.c.h.b16 %v339
      %v607 = vunpack.c.l.b16 %v340
      %v608 = vunpack.c.h.b16 %v340
      %v609 = vunpack.c.l.b16 %v341
      %v610 = vunpack.c.h.b16 %v341
      %v611 = vunpack.c.l.b16 %v342
      %v612 = vunpack.c.l.b16 %v343
      %v613 = vunpack.c.h.b16 %v343
      %v614 = vunpack.c.l.b16 %v344
      %v615 = vunpack.c.h.b16 %v344
      %v616 = vunpack.c.l.b16 %v345
      %v617 = vunpack.c.h.b16 %v345
      %v618 = vunpack.c.l.b16 %v346
      %v619 = vunpack.c.l.b16 %v347
      %v620 = vunpack.c.h.b16 %v347
      %v621 = vunpack.c.l.b16 %v348
      %v622 = vunpack.c.h.b16 %v348
      %v623 = vunpack.c.l.b16 %v349
      %v624 = vunpack.c.h.b16 %v349
      %v625 = vunpack.c.l.b16 %v350
      %v626 = vunpack.c.l.b16 %v351
      %v627 = vunpack.c.h.b16 %v351
      %v628 = vunpack.c.l.b16 %v352
      %v629 = vunpack.c.h.b16 %v352
      %v630 = vunpack.c.l.b16 %v353
      %v631 = vunpack.c.h.b16 %v353
      %v632 = vunpack.c.l.b16 %v354
      %v633 = vpack.c.b16 %v612, %v605
      %v634 = vpack.c.b16 %v613, %v606
      %v635 = vpack.c.b16 %v614, %v607
      %v636 = vpack.c.b16 %v615, %v608
      %v637 = vpack.c.b16 %v616, %v609
      %v638 = vpack.c.b16 %v617, %v610
      %v639 = vpack.c.b16 %v618, %v611
      %v640 = vpack.c.b16 %v626, %v619
      %v641 = vpack.c.b16 %v627, %v620
      %v642 = vpack.c.b16 %v628, %v621
      %v643 = vpack.c.b16 %v629, %v622
      %v644 = vpack.c.b16 %v630, %v623
      %v645 = vpack.c.b16 %v631, %v624
      %v646 = vpack.c.b16 %v632, %v625
      %v885 = vunpack.c.l.b16 %v355
      %v886 = vunpack.c.h.b16 %v355
      %v887 = vunpack.c.l.b16 %v356
      %v888 = vunpack.c.h.b16 %v356
      %v889 = vunpack.c.l.b16 %v357
      %v890 = vunpack.c.h.b16 %v357
      %v891 = vunpack.c.l.b16 %v358
      %v892 = vunpack.c.h.b16 %v358
      %v893 = vunpack.c.l.b16 %v359
      %v894 = vunpack.c.h.b16 %v359
      %v895 = vunpack.c.l.b16 %v360
      %v896 = vunpack.c.h.b16 %v360
      %v897 = vunpack.c.l.b16 %v361
      %v898 = vunpack.c.h.b16 %v361
      %v899 = vunpack.c.l.b16 %v362
      %v900 = vunpack.c.h.b16 %v362
      %v901 = vunpack.c.l.b16 %v363
      %v902 = vunpack.c.h.b16 %v363
      %v903 = vunpack.c.l.b16 %v364
      %v904 = vunpack.c.h.b16 %v364
      %v905 = vunpack.c.l.b16 %v365
      %v906 = vunpack.c.h.b16 %v365
      %v907 = vunpack.c.l.b16 %v366
      %v908 = vunpack.c.h.b16 %v366
      %v909 = vunpack.c.l.b16 %v367
      %v910 = vunpack.c.h.b16 %v367
      %v911 = vunpack.c.l.b16 %v368
      %v912 = vunpack.c.h.b16 %v368
      %v913 = vunpack.c.l.b16 %v369
      %v914 = vunpack.c.h.b16 %v369
      %v915 = vunpack.c.l.b16 %v370
      %v916 = vunpack.c.h.b16 %v370
      %v917 = vunpack.c.l.b16 %v371
      %v918 = vunpack.c.h.b16 %v371
      %v919 = vunpack.c.l.b16 %v372
      %v920 = vunpack.c.h.b16 %v372
      %v921 = vunpack.c.l.b16 %v373
      %v922 = vunpack.c.h.b16 %v373
      %v923 = vunpack.c.l.b16 %v374
      %v924 = vunpack.c.h.b16 %v374
      %v925 = vunpack.c.l.b16 %v375
      %v926 = vunpack.c.h.b16 %v375
      %v927 = vunpack.c.l.b16 %v376
      %v928 = vunpack.c.h.b16 %v376
      %v929 = vunpack.c.l.b16 %v377
      %v930 = vunpack.c.h.b16 %v377
      %v931 = vunpack.c.l.b16 %v378
      %v932 = vunpack.c.h.b16 %v378
      %v933 = vunpack.c.l.b16 %v379
      %v934 = vunpack.c.h.b16 %v379
      %v935 = vunpack.c.l.b16 %v380
      %v936 = vunpack.c.h.b16 %v380
      %v937 = vunpack.c.l.b16 %v381
      %v938 = vunpack.c.h.b16 %v381
      %v939 = vunpack.c.l.b16 %v382
      %v940 = vunpack.c.h.b16 %v382
      %v941 = vunpack.c.l.b16 %v383
      %v942 = vunpack.c.h.b16 %v383
      %v943 = vunpack.c.l.b16 %v384
      %v944 = vunpack.c.h.b16 %v384
      %v945 = vunpack.c.l.b16 %v385
      %v946 = vunpack.c.h.b16 %v385
      %v947 = vunpack.c.l.b16 %v386
      %v948 = vunpack.c.h.b16 %v386
      %v949 = vunpack.c.l.b16 %v387
      %v950 = vunpack.c.h.b16 %v387
      %v951 = vunpack.c.l.b16 %v388
      %v952 = vunpack.c.h.b16 %v388
      %v953 = vunpack.c.l.b16 %v389
      %v954 = vunpack.c.h.b16 %v389
      %v955 = vunpack.c.l.b16 %v390
      %v956 = vunpack.c.h.b16 %v390
      %v957 = vunpack.c.l.b16 %v391
      %v958 = vunpack.c.h.b16 %v391
      %v959 = vunpack.c.l.b16 %v392
      %v960 = vunpack.c.h.b16 %v392
      %v961 = vunpack.c.l.b16 %v393
      %v962 = vunpack.c.h.b16 %v393
      %v963 = vunpack.c.l.b16 %v394
      %v964 = vunpack.c.h.b16 %v394
      %v965 = vunpack.c.l.b16 %v395
      %v966 = vunpack.c.h.b16 %v395
      %v967 = vunpack.c.l.b16 %v396
      %v968 = vunpack.c.h.b16 %v396
      %v969 = vunpack.c.l.b16 %v397
      %v970 = vunpack.c.h.b16 %v397
      %v971 = vunpack.c.l.b16 %v398
      %v972 = vunpack.c.h.b16 %v398
      %v973 = vunpack.c.l.b16 %v399
      %v974 = vunpack.c.h.b16 %v399
      %v975 = vunpack.c.l.b16 %v400
      %v976 = vunpack.c.h.b16 %v400
      %v977 = vunpack.c.l.b16 %v401
      %v978 = vunpack.c.h.b16 %v401
      %v979 = vunpack.c.l.b16 %v402
      %v980 = vunpack.c.h.b16 %v402
      %v981 = vunpack.c.l.b16 %v403
      %v982 = vunpack.c.h.b16 %v403
      %v983 = vunpack.c.l.b16 %v404
      %v984 = vunpack.c.h.b16 %v404
      %v985 = vunpack.c.l.b16 %v405
      %v986 = vunpack.c.h.b16 %v405
      %v987 = vunpack.c.l.b16 %v406
      %v988 = vunpack.c.h.b16 %v406
      %v989 = vunpack.c.l.b16 %v407
      %v990 = vunpack.c.h.b16 %v407
      %v991 = vunpack.c.l.b16 %v408
      %v992 = vunpack.c.h.b16 %v408
      %v993 = vunpack.c.l.b16 %v409
      %v994 = vunpack.c.h.b16 %v409
      %v995 = vunpack.c.l.b16 %v410
      %v996 = vunpack.c.h.b16 %v410
      %v997 = vunpack.c.l.b16 %v411
      %v998 = vunpack.c.h.b16 %v411
      %v999 = vunpack.c.l.b16 %v412
      %v1000 = vunpack.c.h.b16 %v412
      %v1001 = vunpack.c.l.b16 %v413
      %v1002 = vunpack.c.h.b16 %v413
      %v1003 = vunpack.c.l.b16 %v414
      %v1004 = vunpack.c.h.b16 %v414
      %v1005 = vunpack.c.l.b16 %v415
      %v1006 = vunpack.c.h.b16 %v415
      %v1007 = vunpack.c.l.b16 %v416
      %v1008 = vunpack.c.h.b16 %v416
      %v1009 = vunpack.c.l.b16 %v417
      %v1010 = vunpack.c.h.b16 %v417
      %v1011 = vunpack.c.l.b16 %v418
      %v1012 = vunpack.c.h.b16 %v418
      %v1013 = vunpack.c.l.b16 %v419
      %v1014 = vunpack.c.h.b16 %v419
      %v1015 = vunpack.c.l.b16 %v420
      %v1016 = vunpack.c.h.b16 %v420
      %v1017 = vunpack.c.l.b16 %v421
      %v1018 = vunpack.c.h.b16 %v421
      %v1019 = vunpack.c.l.b16 %v422
      %v1020 = vunpack.c.h.b16 %v422
      %v1021 = vunpack.c.l.b16 %v423
      %v1022 = vunpack.c.h.b16 %v423
      %v1023 = vunpack.c.l.b16 %v424
      %v1024 = vunpack.c.h.b16 %v424
      %v1025 = vunpack.c.l.b16 %v425
      %v1026 = vunpack.c.h.b16 %v425
      %v1027 = vunpack.c.l.b16 %v426
      %v1028 = vunpack.c.h.b16 %v426
      %v1029 = vunpack.c.l.b16 %v427
      %v1030 = vunpack.c.h.b16 %v427
      %v1031 = vunpack.c.l.b16 %v428
      %v1032 = vunpack.c.h.b16 %v428
      %v1033 = vunpack.c.l.b16 %v429
      %v1034 = vunpack.c.h.b16 %v429
      %v1035 = vunpack.c.l.b16 %v430
      %v1036 = vunpack.c.h.b16 %v430
      %v1037 = vunpack.c.l.b16 %v431
      %v1038 = vunpack.c.h.b16 %v431
      %v1039 = vunpack.c.l.b16 %v432
      %v1040 = vunpack.c.h.b16 %v432
      %v1041 = vunpack.c.l.b16 %v433
      %v1042 = vunpack.c.h.b16 %v433
      %v1043 = vunpack.c.l.b16 %v434
      %v1044 = vunpack.c.h.b16 %v434
      %v1045 = vunpack.c.l.b16 %v435
      %v1046 = vunpack.c.h.b16 %v435
      %v1047 = vunpack.c.l.b16 %v436
      %v1048 = vunpack.c.h.b16 %v436
      %v1049 = vunpack.c.l.b16 %v437
      %v1050 = vunpack.c.h.b16 %v437
      %v1051 = vunpack.c.l.b16 %v438
      %v1052 = vunpack.c.h.b16 %v438
      %v1053 = vunpack.c.l.b16 %v439
      %v1054 = vunpack.c.h.b16 %v439
      %v1055 = vunpack.c.l.b16 %v440
      %v1056 = vunpack.c.h.b16 %v440
      %v1057 = vunpack.c.l.b16 %v441
      %v1058 = vunpack.c.h.b16 %v441
      %v1059 = vunpack.c.l.b16 %v442
      %v1060 = vunpack.c.h.b16 %v442
      %v1061 = vunpack.c.l.b16 %v443
      %v1062 = vunpack.c.h.b16 %v443
      %v1063 = vunpack.c.l.b16 %v444
      %v1064 = vunpack.c.h.b16 %v444
      %v1065 = vunpack.c.l.b16 %v445
      %v1066 = vunpack.c.h.b16 %v445
      %v1067 = vunpack.c.l.b16 %v446
      %v1068 = vunpack.c.h.b16 %v446
      %v1069 = vunpack.c.l.b16 %v447
      %v1070 = vunpack.c.h.b16 %v447
      %v1071 = vunpack.c.l.b16 %v448
      %v1072 = vunpack.c.h.b16 %v448
      %v1073 = vunpack.c.l.b16 %v449
      %v1074 = vunpack.c.h.b16 %v449
      %v1075 = vunpack.c.l.b16 %v450
      %v1076 = vunpack.c.h.b16 %v450
      %v1077 = vunpack.c.l.b16 %v451
      %v1078 = vunpack.c.h.b16 %v451
      %v1079 = vunpack.c.l.b16 %v452
      %v1080 = vunpack.c.h.b16 %v452
      %v1081 = vunpack.c.l.b16 %v453
      %v1082 = vunpack.c.h.b16 %v453
      %v1083 = vunpack.c.l.b16 %v454
      %v1084 = vunpack.c.h.b16 %v454
      %v1085 = vunpack.c.l.b16 %v455
      %v1086 = vunpack.c.h.b16 %v455
      %v1087 = vunpack.c.l.b16 %v456
      %v1088 = vunpack.c.h.b16 %v456
      %v1089 = vunpack.c.l.b16 %v457
      %v1090 = vunpack.c.h.b16 %v457
      %v1091 = vunpack.c.l.b16 %v458
      %v1092 = vunpack.c.h.b16 %v458
      %v1093 = vunpack.c.l.b16 %v459
      %v1094 = vunpack.c.h.b16 %v459
      %v1095 = vunpack.c.l.b16 %v460
      %v1096 = vunpack.c.h.b16 %v460
      %v1097 = vunpack.c.l.b16 %v461
      %v1098 = vunpack.c.h.b16 %v461
      %v1099 = vunpack.c.l.b16 %v462
      %v1100 = vunpack.c.h.b16 %v462
      %v1101 = vunpack.c.l.b16 %v463
      %v1102 = vunpack.c.h.b16 %v463
      %v1103 = vunpack.c.l.b16 %v464
      %v1104 = vunpack.c.h.b16 %v464
      %v1105 = vunpack.c.l.b16 %v465
      %v1106 = vunpack.c.h.b16 %v465
      %v1107 = vunpack.c.l.b16 %v466
      %v1108 = vunpack.c.h.b16 %v466
      %v1109 = vunpack.c.l.b16 %v467
      %v1110 = vunpack.c.h.b16 %v467
      %v1111 = vunpack.c.l.b16 %v468
      %v1112 = vunpack.c.h.b16 %v468
      %v1113 = vunpack.c.l.b16 %v469
      %v1114 = vunpack.c.h.b16 %v469
      %v1115 = vunpack.c.l.b16 %v470
      %v1116 = vunpack.c.h.b16 %v470
      %v1117 = vunpack.c.l.b16 %v471
      %v1118 = vunpack.c.h.b16 %v471
      %v1119 = vunpack.c.l.b16 %v472
      %v1120 = vunpack.c.h.b16 %v472
      %v1121 = vunpack.c.l.b16 %v473
      %v1122 = vunpack.c.h.b16 %v473
      %v1123 = vunpack.c.l.b16 %v474
      %v1124 = vunpack.c.h.b16 %v474
      %v1125 = vunpack.c.l.b16 %v475
      %v1126 = vunpack.c.h.b16 %v475
      %v1127 = vunpack.c.l.b16 %v476
      %v1128 = vunpack.c.h.b16 %v476
      %v1129 = vunpack.c.l.b16 %v477
      %v1130 = vunpack.c.h.b16 %v477
      %v1131 = vunpack.c.l.b16 %v478
      %v1132 = vunpack.c.h.b16 %v478
      %v1133 = vunpack.c.l.b16 %v479
      %v1134 = vunpack.c.h.b16 %v479
      %v1135 = vunpack.c.l.b16 %v480
      %v1136 = vunpack.c.h.b16 %v480
      %v1137 = vunpack.c.l.b16 %v481
      %v1138 = vunpack.c.h.b16 %v481
      %v1139 = vunpack.c.l.b16 %v482
      %v1140 = vunpack.c.h.b16 %v482
      %v1141 = vunpack.c.l.b16 %v483
      %v1142 = vunpack.c.h.b16 %v483
      %v1143 = vunpack.c.l.b16 %v484
      %v1144 = vunpack.c.h.b16 %v484
      %v1145 = vunpack.c.l.b16 %v485
      %v1146 = vunpack.c.h.b16 %v485
      %v1147 = vunpack.c.l.b16 %v486
      %v1148 = vunpack.c.h.b16 %v486
      %v1149 = vunpack.c.l.b16 %v487
      %v1150 = vunpack.c.h.b16 %v487
      %v1151 = vunpack.c.l.b16 %v488
      %v1152 = vunpack.c.h.b16 %v488
      %v1153 = vunpack.c.l.b16 %v489
      %v1154 = vunpack.c.h.b16 %v489
      %v1155 = vunpack.c.l.b16 %v490
      %v1156 = vunpack.c.h.b16 %v490
      %v1157 = vunpack.c.l.b16 %v491
      %v1158 = vunpack.c.h.b16 %v491
      %v1159 = vunpack.c.l.b16 %v492
      %v1160 = vunpack.c.h.b16 %v492
      %v1161 = vunpack.c.l.b16 %v493
      %v1162 = vunpack.c.h.b16 %v493
      %v1163 = vunpack.c.l.b16 %v494
      %v1164 = vunpack.c.h.b16 %v494
      %v1165 = vunpack.c.l.b16 %v495
      %v1166 = vunpack.c.h.b16 %v495
      %v1167 = vunpack.c.l.b16 %v496
      %v1168 = vunpack.c.h.b16 %v496
      %v1169 = vunpack.c.l.b16 %v497
      %v1170 = vunpack.c.h.b16 %v497
      %v1171 = vunpack.c.l.b16 %v498
      %v1172 = vunpack.c.h.b16 %v498
      %v1173 = vunpack.c.l.b16 %v499
      %v1174 = vunpack.c.h.b16 %v499
      %v1175 = vunpack.c.l.b16 %v500
      %v1176 = vunpack.c.h.b16 %v500
      %v1177 = vunpack.c.l.b16 %v501
      %v1178 = vunpack.c.h.b16 %v501
      %v1179 = vunpack.c.l.b16 %v502
      %v1180 = vunpack.c.h.b16 %v502
      %v1181 = vunpack.c.l.b16 %v503
      %v1182 = vunpack.c.h.b16 %v503
      %v1183 = vunpack.c.l.b16 %v504
      %v1184 = vunpack.c.h.b16 %v504
      %v1185 = vunpack.c.l.b16 %v505
      %v1186 = vunpack.c.h.b16 %v505
      %v1187 = vunpack.c.l.b16 %v506
      %v1188 = vunpack.c.h.b16 %v506
      %v1189 = vunpack.c.l.b16 %v507
      %v1190 = vunpack.c.h.b16 %v507
      %v1191 = vunpack.c.l.b16 %v508
      %v1192 = vunpack.c.h.b16 %v508
      %v1193 = vunpack.c.l.b16 %v509
      %v1194 = vunpack.c.h.b16 %v509
      %v1195 = vunpack.c.l.b16 %v510
      %v1196 = vunpack.c.h.b16 %v510
      %v1197 = vunpack.c.l.b16 %v511
      %v1198 = vunpack.c.h.b16 %v511
      %v1199 = vunpack.c.l.b16 %v512
      %v1200 = vunpack.c.h.b16 %v512
      %v1201 = vunpack.c.l.b16 %v513
      %v1202 = vunpack.c.h.b16 %v513
      %v1203 = vunpack.c.l.b16 %v514
      %v1204 = vunpack.c.h.b16 %v514
      %v1205 = vunpack.c.l.b16 %v515
      %v1206 = vunpack.c.h.b16 %v515
      %v1207 = vunpack.c.l.b16 %v516
      %v1208 = vunpack.c.h.b16 %v516
      %v1209 = vunpack.c.l.b16 %v517
      %v1210 = vunpack.c.h.b16 %v517
      %v1211 = vunpack.c.l.b16 %v518
      %v1212 = vunpack.c.h.b16 %v518
      %v1213 = vunpack.c.l.b16 %v519
      %v1214 = vunpack.c.h.b16 %v519
      %v1215 = vunpack.c.l.b16 %v520
      %v1216 = vunpack.c.h.b16 %v520
      %v1217 = vunpack.c.l.b16 %v521
      %v1218 = vunpack.c.h.b16 %v521
      %v1219 = vunpack.c.l.b16 %v522
      %v1220 = vunpack.c.h.b16 %v522
      %v1221 = vunpack.c.l.b16 %v523
      %v1222 = vunpack.c.h.b16 %v523
      %v1223 = vunpack.c.l.b16 %v524
      %v1224 = vunpack.c.h.b16 %v524
      %v1225 = vunpack.c.l.b16 %v525
      %v1226 = vunpack.c.h.b16 %v525
      %v1227 = vunpack.c.l.b16 %v526
      %v1228 = vunpack.c.h.b16 %v526
      %v1229 = vunpack.c.l.b16 %v527
      %v1230 = vunpack.c.h.b16 %v527
      %v1231 = vunpack.c.l.b16 %v528
      %v1232 = vunpack.c.h.b16 %v528
      %v1233 = vunpack.c.l.b16 %v529
      %v1234 = vunpack.c.h.b16 %v529
      %v1235 = vunpack.c.l.b16 %v530
      %v1236 = vunpack.c.h.b16 %v530
      %v1237 = vunpack.c.l.b16 %v531
      %v1238 = vunpack.c.h.b16 %v531
      %v1239 = vunpack.c.l.b16 %v532
      %v1240 = vunpack.c.h.b16 %v532
      %v1241 = vunpack.c.l.b16 %v533
      %v1242 = vunpack.c.h.b16 %v533
      %v1243 = vunpack.c.l.b16 %v534
      %v1244 = vunpack.c.h.b16 %v534
      %v1245 = vunpack.c.l.b16 %v535
      %v1246 = vunpack.c.h.b16 %v535
      %v1247 = vunpack.c.l.b16 %v536
      %v1248 = vunpack.c.h.b16 %v536
      %v1249 = vunpack.c.l.b16 %v537
      %v1250 = vunpack.c.h.b16 %v537
      %v1251 = vunpack.c.l.b16 %v538
      %v1252 = vunpack.c.h.b16 %v538
      %v1253 = vunpack.c.l.b16 %v539
      %v1254 = vunpack.c.h.b16 %v539
      %v1255 = vunpack.c.l.b16 %v540
      %v1256 = vunpack.c.h.b16 %v540
      %v1257 = vunpack.c.l.b16 %v541
      %v1258 = vunpack.c.h.b16 %v541
      %v1259 = vunpack.c.l.b16 %v542
      %v1260 = vunpack.c.h.b16 %v542
      %v1261 = vunpack.c.l.b16 %v543
      %v1262 = vunpack.c.h.b16 %v543
      %v1263 = vunpack.c.l.b16 %v544
      %v1264 = vunpack.c.h.b16 %v544
      %v1265 = vunpack.c.l.b16 %v545
      %v1266 = vunpack.c.h.b16 %v545
      %v1267 = vunpack.c.l.b16 %v546
      %v1268 = vunpack.c.h.b16 %v546
      %v1269 = vunpack.c.l.b16 %v547
      %v1270 = vunpack.c.h.b16 %v547
      %v1271 = vunpack.c.l.b16 %v548
      %v1272 = vunpack.c.h.b16 %v548
      %v1273 = vunpack.c.l.b16 %v549
      %v1274 = vunpack.c.h.b16 %v549
      %v1275 = vunpack.c.l.b16 %v550
      %v1276 = vunpack.c.h.b16 %v550
      %v1277 = vunpack.c.l.b16 %v551
      %v1278 = vunpack.c.h.b16 %v551
      %v1279 = vunpack.c.l.b16 %v552
      %v1280 = vunpack.c.h.b16 %v552
      %v1281 = vunpack.c.l.b16 %v553
      %v1282 = vunpack.c.h.b16 %v553
      %v1283 = vunpack.c.l.b16 %v554
      %v1284 = vunpack.c.h.b16 %v554
      %v1285 = vunpack.c.l.b16 %v555
      %v1286 = vunpack.c.h.b16 %v555
      %v1287 = vunpack.c.l.b16 %v556
      %v1288 = vunpack.c.h.b16 %v556
      %v1289 = vunpack.c.l.b16 %v557
      %v1290 = vunpack.c.h.b16 %v557
      %v1291 = vunpack.c.l.b16 %v558
      %v1292 = vunpack.c.h.b16 %v558
      %v1293 = vunpack.c.l.b16 %v559
      %v1294 = vunpack.c.h.b16 %v559
      %v1295 = vunpack.c.l.b16 %v560
      %v1296 = vunpack.c.h.b16 %v560
      %v1297 = vunpack.c.l.b16 %v561
      %v1298 = vunpack.c.h.b16 %v561
      %v1299 = vunpack.c.l.b16 %v562
      %v1300 = vunpack.c.h.b16 %v562
      %v1301 = vunpack.c.l.b16 %v563
      %v1302 = vunpack.c.h.b16 %v563
      %v1303 = vunpack.c.l.b16 %v564
      %v1304 = vunpack.c.h.b16 %v564
      %v1305 = vunpack.c.l.b16 %v565
      %v1306 = vunpack.c.h.b16 %v565
      %v1307 = vunpack.c.l.b16 %v566
      %v1308 = vunpack.c.h.b16 %v566
      %v1309 = vunpack.c.l.b16 %v567
      %v1310 = vunpack.c.h.b16 %v567
      %v1311 = vunpack.c.l.b16 %v568
      %v1312 = vunpack.c.h.b16 %v568
      %v1313 = vunpack.c.l.b16 %v569
      %v1314 = vunpack.c.h.b16 %v569
      %v1315 = vunpack.c.l.b16 %v570
      %v1316 = vunpack.c.h.b16 %v570
      %v1317 = vunpack.c.l.b16 %v571
      %v1318 = vunpack.c.h.b16 %v571
      %v1319 = vunpack.c.l.b16 %v572
      %v1320 = vunpack.c.h.b16 %v572
      %v1321 = vunpack.c.l.b16 %v573
      %v1322 = vunpack.c.h.b16 %v573
      %v1323 = vunpack.c.l.b16 %v574
      %v1324 = vunpack.c.h.b16 %v574
      %v1325 = vunpack.c.l.b16 %v575
      %v1326 = vunpack.c.h.b16 %v575
      %v1327 = vunpack.c.l.b16 %v576
      %v1328 = vunpack.c.h.b16 %v576
      %v1329 = vunpack.c.l.b16 %v577
      %v1330 = vunpack.c.h.b16 %v577
      %v1331 = vunpack.c.l.b16 %v578
      %v1332 = vunpack.c.h.b16 %v578
      %v1333 = vpack.c.b16 %v889, %v885
      %v1334 = vpack.c.b16 %v890, %v886
      %v1335 = vpack.c.b16 %v891, %v887
      %v1336 = vpack.c.b16 %v892, %v888
      %v1337 = vpack.c.b16 %v897, %v893
      %v1338 = vpack.c.b16 %v898, %v894
      %v1339 = vpack.c.b16 %v899, %v895
      %v1340 = vpack.c.b16 %v900, %v896
      %v1341 = vpack.c.b16 %v905, %v901
      %v1342 = vpack.c.b16 %v906, %v902
      %v1343 = vpack.c.b16 %v907, %v903
      %v1344 = vpack.c.b16 %v908, %v904
      %v1345 = vpack.c.b16 %v913, %v909
      %v1346 = vpack.c.b16 %v914, %v910
      %v1347 = vpack.c.b16 %v915, %v911
      %v1348 = vpack.c.b16 %v916, %v912
      %v1349 = vpack.c.b16 %v921, %v917
      %v1350 = vpack.c.b16 %v922, %v918
      %v1351 = vpack.c.b16 %v923, %v919
      %v1352 = vpack.c.b16 %v924, %v920
      %v1353 = vpack.c.b16 %v929, %v925
      %v1354 = vpack.c.b16 %v930, %v926
      %v1355 = vpack.c.b16 %v931, %v927
      %v1356 = vpack.c.b16 %v932, %v928
      %v1357 = vpack.c.b16 %v937, %v933
      %v1358 = vpack.c.b16 %v938, %v934
      %v1359 = vpack.c.b16 %v939, %v935
      %v1360 = vpack.c.b16 %v940, %v936
      %v1361 = vpack.c.b16 %v945, %v941
      %v1362 = vpack.c.b16 %v946, %v942
      %v1363 = vpack.c.b16 %v947, %v943
      %v1364 = vpack.c.b16 %v948, %v944
      %v1365 = vpack.c.b16 %v953, %v949
      %v1366 = vpack.c.b16 %v954, %v950
      %v1367 = vpack.c.b16 %v955, %v951
      %v1368 = vpack.c.b16 %v956, %v952
      %v1369 = vpack.c.b16 %v961, %v957
      %v1370 = vpack.c.b16 %v962, %v958
      %v1371 = vpack.c.b16 %v963, %v959
      %v1372 = vpack.c.b16 %v964, %v960
      %v1373 = vpack.c.b16 %v969, %v965
      %v1374 = vpack.c.b16 %v970, %v966
      %v1375 = vpack.c.b16 %v971, %v967
      %v1376 = vpack.c.b16 %v972, %v968
      %v1377 = vpack.c.b16 %v977, %v973
      %v1378 = vpack.c.b16 %v978, %v974
      %v1379 = vpack.c.b16 %v979, %v975
      %v1380 = vpack.c.b16 %v980, %v976
      %v1381 = vpack.c.b16 %v985, %v981
      %v1382 = vpack.c.b16 %v986, %v982
      %v1383 = vpack.c.b16 %v987, %v983
      %v1384 = vpack.c.b16 %v988, %v984
      %v1385 = vpack.c.b16 %v993, %v989
      %v1386 = vpack.c.b16 %v994, %v990
      %v1387 = vpack.c.b16 %v995, %v991
      %v1388 = vpack.c.b16 %v996, %v992
      %v1389 = vpack.c.b16 %v1001, %v997
      %v1390 = vpack.c.b16 %v1002, %v998
      %v1391 = vpack.c.b16 %v1003, %v999
      %v1392 = vpack.c.b16 %v1004, %v1000
      %v1393 = vpack.c.b16 %v1009, %v1005
      %v1394 = vpack.c.b16 %v1010, %v1006
      %v1395 = vpack.c.b16 %v1011, %v1007
      %v1396 = vpack.c.b16 %v1012, %v1008
      %v1397 = vpack.c.b16 %v1017, %v1013
      %v1398 = vpack.c.b16 %v1018, %v1014
      %v1399 = vpack.c.b16 %v1019, %v1015
      %v1400 = vpack.c.b16 %v1020, %v1016
      %v1401 = vpack.c.b16 %v1025, %v1021
      %v1402 = vpack.c.b16 %v1026, %v1022
      %v1403 = vpack.c.b16 %v1027, %v1023
      %v1404 = vpack.c.b16 %v1028, %v1024
      %v1405 = vpack.c.b16 %v1033, %v1029
      %v1406 = vpack.c.b16 %v1034, %v1030
      %v1407 = vpack.c.b16 %v1035, %v1031
      %v1408 = vpack.c.b16 %v1036, %v1032
      %v1409 = vpack.c.b16 %v1041, %v1037
      %v1410 = vpack.c.b16 %v1042, %v1038
      %v1411 = vpack.c.b16 %v1043, %v1039
      %v1412 = vpack.c.b16 %v1044, %v1040
      %v1413 = vpack.c.b16 %v1049, %v1045
      %v1414 = vpack.c.b16 %v1050, %v1046
      %v1415 = vpack.c.b16 %v1051, %v1047
      %v1416 = vpack.c.b16 %v1052, %v1048
      %v1417 = vpack.c.b16 %v1057, %v1053
      %v1418 = vpack.c.b16 %v1058, %v1054
      %v1419 = vpack.c.b16 %v1059, %v1055
      %v1420 = vpack.c.b16 %v1060, %v1056
      %v1421 = vpack.c.b16 %v1065, %v1061
      %v1422 = vpack.c.b16 %v1066, %v1062
      %v1423 = vpack.c.b16 %v1067, %v1063
      %v1424 = vpack.c.b16 %v1068, %v1064
      %v1425 = vpack.c.b16 %v1073, %v1069
      %v1426 = vpack.c.b16 %v1074, %v1070
      %v1427 = vpack.c.b16 %v1075, %v1071
      %v1428 = vpack.c.b16 %v1076, %v1072
      %v1429 = vpack.c.b16 %v1081, %v1077
      %v1430 = vpack.c.b16 %v1082, %v1078
      %v1431 = vpack.c.b16 %v1083, %v1079
      %v1432 = vpack.c.b16 %v1084, %v1080
      %v1433 = vpack.c.b16 %v1089, %v1085
      %v1434 = vpack.c.b16 %v1090, %v1086
      %v1435 = vpack.c.b16 %v1091, %v1087
      %v1436 = vpack.c.b16 %v1092, %v1088
      %v1437 = vpack.c.b16 %v1097, %v1093
      %v1438 = vpack.c.b16 %v1098, %v1094
      %v1439 = vpack.c.b16 %v1099, %v1095
      %v1440 = vpack.c.b16 %v1100, %v1096
      %v1441 = vpack.c.b16 %v1105, %v1101
      %v1442 = vpack.c.b16 %v1106, %v1102
      %v1443 = vpack.c.b16 %v1107, %v1103
      %v1444 = vpack.c.b16 %v1108, %v1104
      %v1445 = vpack.c.b16 %v1113, %v1109
      %v1446 = vpack.c.b16 %v1114, %v1110
      %v1447 = vpack.c.b16 %v1115, %v1111
      %v1448 = vpack.c.b16 %v1116, %v1112
      %v1449 = vpack.c.b16 %v1121, %v1117
      %v1450 = vpack.c.b16 %v1122, %v1118
      %v1451 = vpack.c.b16 %v1123, %v1119
      %v1452 = vpack.c.b16 %v1124, %v1120
      %v1453 = vpack.c.b16 %v1129, %v1125
      %v1454 = vpack.c.b16 %v1130, %v1126
      %v1455 = vpack.c.b16 %v1131, %v1127
      %v1456 = vpack.c.b16 %v1132, %v1128
      %v1457 = vpack.c.b16 %v1137, %v1133
      %v1458 = vpack.c.b16 %v1138, %v1134
      %v1459 = vpack.c.b16 %v1139, %v1135
      %v1460 = vpack.c.b16 %v1140, %v1136
      %v1461 = vpack.c.b16 %v1145, %v1141
      %v1462 = vpack.c.b16 %v1146, %v1142
      %v1463 = vpack.c.b16 %v1147, %v1143
      %v1464 = vpack.c.b16 %v1148, %v1144
      %v1465 = vpack.c.b16 %v1153, %v1149
      %v1466 = vpack.c.b16 %v1154, %v1150
      %v1467 = vpack.c.b16 %v1155, %v1151
      %v1468 = vpack.c.b16 %v1156, %v1152
      %v1469 = vpack.c.b16 %v1161, %v1157
      %v1470 = vpack.c.b16 %v1162, %v1158
      %v1471 = vpack.c.b16 %v1163, %v1159
      %v1472 = vpack.c.b16 %v1164, %v1160
      %v1473 = vpack.c.b16 %v1169, %v1165
      %v1474 = vpack.c.b16 %v1170, %v1166
      %v1475 = vpack.c.b16 %v1171, %v1167
      %v1476 = vpack.c.b16 %v1172, %v1168
      %v1477 = vpack.c.b16 %v1177, %v1173
      %v1478 = vpack.c.b16 %v1178, %v1174
      %v1479 = vpack.c.b16 %v1179, %v1175
      %v1480 = vpack.c.b16 %v1180, %v1176
      %v1481 = vpack.c.b16 %v1185, %v1181
      %v1482 = vpack.c.b16 %v1186, %v1182
      %v1483 = vpack.c.b16 %v1187, %v1183
      %v1484 = vpack.c.b16 %v1188, %v1184
      %v1485 = vpack.c.b16 %v1193, %v1189
      %v1486 = vpack.c.b16 %v1194, %v1190
      %v1487 = vpack.c.b16 %v1195, %v1191
      %v1488 = vpack.c.b16 %v1196, %v1192
      %v1489 = vpack.c.b16 %v1201, %v1197
      %v1490 = vpack.c.b16 %v1202, %v1198
      %v1491 = vpack.c.b16 %v1203, %v1199
      %v1492 = vpack.c.b16 %v1204, %v1200
      %v1493 = vpack.c.b16 %v1209, %v1205
      %v1494 = vpack.c.b16 %v1210, %v1206
      %v1495 = vpack.c.b16 %v1211, %v1207
      %v1496 = vpack.c.b16 %v1212, %v1208
      %v1497 = vpack.c.b16 %v1217, %v1213
      %v1498 = vpack.c.b16 %v1218, %v1214
      %v1499 = vpack.c.b16 %v1219, %v1215
      %v1500 = vpack.c.b16 %v1220, %v1216
      %v1501 = vpack.c.b16 %v1225, %v1221
      %v1502 = vpack.c.b16 %v1226, %v1222
      %v1503 = vpack.c.b16 %v1227, %v1223
      %v1504 = vpack.c.b16 %v1228, %v1224
      %v1505 = vpack.c.b16 %v1233, %v1229
      %v1506 = vpack.c.b16 %v1234, %v1230
      %v1507 = vpack.c.b16 %v1235, %v1231
      %v1508 = vpack.c.b16 %v1236, %v1232
      %v1509 = vpack.c.b16 %v1241, %v1237
      %v1510 = vpack.c.b16 %v1242, %v1238
      %v1511 = vpack.c.b16 %v1243, %v1239
      %v1512 = vpack.c.b16 %v1244, %v1240
      %v1513 = vpack.c.b16 %v1249, %v1245
      %v1514 = vpack.c.b16 %v1250, %v1246
      %v1515 = vpack.c.b16 %v1251, %v1247
      %v1516 = vpack.c.b16 %v1252, %v1248
      %v1517 = vpack.c.b16 %v1257, %v1253
      %v1518 = vpack.c.b16 %v1258, %v1254
      %v1519 = vpack.c.b16 %v1259, %v1255
      %v1520 = vpack.c.b16 %v1260, %v1256
      %v1521 = vpack.c.b16 %v1265, %v1261
      %v1522 = vpack.c.b16 %v1266, %v1262
      %v1523 = vpack.c.b16 %v1267, %v1263
      %v1524 = vpack.c.b16 %v1268, %v1264
      %v1525 = vpack.c.b16 %v1273, %v1269
      %v1526 = vpack.c.b16 %v1274, %v1270
      %v1527 = vpack.c.b16 %v1275, %v1271
      %v1528 = vpack.c.b16 %v1276, %v1272
      %v1529 = vpack.c.b16 %v1281, %v1277
      %v1530 = vpack.c.b16 %v1282, %v1278
      %v1531 = vpack.c.b16 %v1283, %v1279
      %v1532 = vpack.c.b16 %v1284, %v1280
      %v1533 = vpack.c.b16 %v1289, %v1285
      %v1534 = vpack.c.b16 %v1290, %v1286
      %v1535 = vpack.c.b16 %v1291, %v1287
      %v1536 = vpack.c.b16 %v1292, %v1288
      %v1537 = vpack.c.b16 %v1297, %v1293
      %v1538 = vpack.c.b16 %v1298, %v1294
      %v1539 = vpack.c.b16 %v1299, %v1295
      %v1540 = vpack.c.b16 %v1300, %v1296
      %v1541 = vpack.c.b16 %v1305, %v1301
      %v1542 = vpack.c.b16 %v1306, %v1302
      %v1543 = vpack.c.b16 %v1307, %v1303
      %v1544 = vpack.c.b16 %v1308, %v1304
      %v1545 = vpack.c.b16 %v1313, %v1309
      %v1546 = vpack.c.b16 %v1314, %v1310
      %v1547 = vpack.c.b16 %v1315, %v1311
      %v1548 = vpack.c.b16 %v1316, %v1312
      %v1549 = vpack.c.b16 %v1321, %v1317
      %v1550 = vpack.c.b16 %v1322, %v1318
      %v1551 = vpack.c.b16 %v1323, %v1319
      %v1552 = vpack.c.b16 %v1324, %v1320
      %v1553 = vpack.c.b16 %v1329, %v1325
      %v1554 = vpack.c.b16 %v1330, %v1326
      %v1555 = vpack.c.b16 %v1331, %v1327
      %v1556 = vpack.c.b16 %v1332, %v1328
      %1781 = vmatpush.bf16.msra.mxu0 %v1361
      %1782 = vmatpush.bf16.msra.mxu0 %v1357
      %1783 = vmatpush.bf16.msra.mxu0 %v1353
      %1784 = vmatpush.bf16.msra.mxu0 %v1349
      %1785 = vmatpush.bf16.msra.mxu0 %v1345
      %1786 = vmatpush.bf16.msra.mxu0 %v1341
      %1787 = vmatpush.bf16.msra.mxu0 %v1337
      %1788 = vmatpush.bf16.msra.mxu0 %v1333
      %1789 = vmatmul.bf16.gmra.mxu0 %v633
      %v1790 = vpop.f32.mrf.mxu0
      %v1791 = vadd.f32 %v581, %v1790
      %v1792 = vpop.f32.mrf.mxu0
      %v1793 = vadd.f32 %v581, %v1792
      %1794 = vmatmul.bf16.gmra.mxu0 %v640
      %v1795 = vpop.f32.mrf.mxu0
      %v1796 = vadd.f32 %v581, %v1795
      %v1797 = vpop.f32.mrf.mxu0
      %v1798 = vadd.f32 %v581, %v1797
      %1799 = vdwg.mxu0
      %1800 = vmatpush.bf16.msra.mxu0 %v1393
      %1801 = vmatpush.bf16.msra.mxu0 %v1389
      %1802 = vmatpush.bf16.msra.mxu0 %v1385
      %1803 = vmatpush.bf16.msra.mxu0 %v1381
      %1804 = vmatpush.bf16.msra.mxu0 %v1377
      %1805 = vmatpush.bf16.msra.mxu0 %v1373
      %1806 = vmatpush.bf16.msra.mxu0 %v1369
      %1807 = vmatpush.bf16.msra.mxu0 %v1365
      %1808 = vmatmul.bf16.gmra.mxu0 %v634
      %v1809 = vpop.f32.mrf.mxu0
      %v1810 = vadd.f32 %v1791, %v1809
      %v1811 = vpop.f32.mrf.mxu0
      %v1812 = vadd.f32 %v1793, %v1811
      %1813 = vmatmul.bf16.gmra.mxu0 %v641
      %v1814 = vpop.f32.mrf.mxu0
      %v1815 = vadd.f32 %v1796, %v1814
      %v1816 = vpop.f32.mrf.mxu0
      %v1817 = vadd.f32 %v1798, %v1816
      %1818 = vdwg.mxu0
      %1819 = vmatpush.bf16.msra.mxu0 %v1425
      %1820 = vmatpush.bf16.msra.mxu0 %v1421
      %1821 = vmatpush.bf16.msra.mxu0 %v1417
      %1822 = vmatpush.bf16.msra.mxu0 %v1413
      %1823 = vmatpush.bf16.msra.mxu0 %v1409
      %1824 = vmatpush.bf16.msra.mxu0 %v1405
      %1825 = vmatpush.bf16.msra.mxu0 %v1401
      %1826 = vmatpush.bf16.msra.mxu0 %v1397
      %1827 = vmatmul.bf16.gmra.mxu0 %v635
      %v1828 = vpop.f32.mrf.mxu0
      %v1829 = vadd.f32 %v1810, %v1828
      %v1830 = vpop.f32.mrf.mxu0
      %v1831 = vadd.f32 %v1812, %v1830
      %1832 = vmatmul.bf16.gmra.mxu0 %v642
      %v1833 = vpop.f32.mrf.mxu0
      %v1834 = vadd.f32 %v1815, %v1833
      %v1835 = vpop.f32.mrf.mxu0
      %v1836 = vadd.f32 %v1817, %v1835
      %1837 = vdwg.mxu0
      %1838 = vmatpush.bf16.msra.mxu0 %v1457
      %1839 = vmatpush.bf16.msra.mxu0 %v1453
      %1840 = vmatpush.bf16.msra.mxu0 %v1449
      %1841 = vmatpush.bf16.msra.mxu0 %v1445
      %1842 = vmatpush.bf16.msra.mxu0 %v1441
      %1843 = vmatpush.bf16.msra.mxu0 %v1437
      %1844 = vmatpush.bf16.msra.mxu0 %v1433
      %1845 = vmatpush.bf16.msra.mxu0 %v1429
      %1846 = vmatmul.bf16.gmra.mxu0 %v636
      %v1847 = vpop.f32.mrf.mxu0
      %v1848 = vadd.f32 %v1829, %v1847
      %v1849 = vpop.f32.mrf.mxu0
      %v1850 = vadd.f32 %v1831, %v1849
      %1851 = vmatmul.bf16.gmra.mxu0 %v643
      %v1852 = vpop.f32.mrf.mxu0
      %v1853 = vadd.f32 %v1834, %v1852
      %v1854 = vpop.f32.mrf.mxu0
      %v1855 = vadd.f32 %v1836, %v1854
      %1856 = vdwg.mxu0
      %1857 = vmatpush.bf16.msra.mxu0 %v1489
      %1858 = vmatpush.bf16.msra.mxu0 %v1485
      %1859 = vmatpush.bf16.msra.mxu0 %v1481
      %1860 = vmatpush.bf16.msra.mxu0 %v1477
      %1861 = vmatpush.bf16.msra.mxu0 %v1473
      %1862 = vmatpush.bf16.msra.mxu0 %v1469
      %1863 = vmatpush.bf16.msra.mxu0 %v1465
      %1864 = vmatpush.bf16.msra.mxu0 %v1461
      %1865 = vmatmul.bf16.gmra.mxu0 %v637
      %v1866 = vpop.f32.mrf.mxu0
      %v1867 = vadd.f32 %v1848, %v1866
      %v1868 = vpop.f32.mrf.mxu0
      %v1869 = vadd.f32 %v1850, %v1868
      %1870 = vmatmul.bf16.gmra.mxu0 %v644
      %v1871 = vpop.f32.mrf.mxu0
      %v1872 = vadd.f32 %v1853, %v1871
      %v1873 = vpop.f32.mrf.mxu0
      %v1874 = vadd.f32 %v1855, %v1873
      %1875 = vdwg.mxu0
      %1876 = vmatpush.bf16.msra.mxu0 %v1521
      %1877 = vmatpush.bf16.msra.mxu0 %v1517
      %1878 = vmatpush.bf16.msra.mxu0 %v1513
      %1879 = vmatpush.bf16.msra.mxu0 %v1509
      %1880 = vmatpush.bf16.msra.mxu0 %v1505
      %1881 = vmatpush.bf16.msra.mxu0 %v1501
      %1882 = vmatpush.bf16.msra.mxu0 %v1497
      %1883 = vmatpush.bf16.msra.mxu0 %v1493
      %1884 = vmatmul.bf16.gmra.mxu0 %v638
      %v1885 = vpop.f32.mrf.mxu0
      %v1886 = vadd.f32 %v1867, %v1885
      %v1887 = vpop.f32.mrf.mxu0
      %v1888 = vadd.f32 %v1869, %v1887
      %1889 = vmatmul.bf16.gmra.mxu0 %v645
      %v1890 = vpop.f32.mrf.mxu0
      %v1891 = vadd.f32 %v1872, %v1890
      %v1892 = vpop.f32.mrf.mxu0
      %v1893 = vadd.f32 %v1874, %v1892
      %1894 = vdwg.mxu0
      %1895 = vmatpush.bf16.msra.mxu0 %v1553
      %1896 = vmatpush.bf16.msra.mxu0 %v1549
      %1897 = vmatpush.bf16.msra.mxu0 %v1545
      %1898 = vmatpush.bf16.msra.mxu0 %v1541
      %1899 = vmatpush.bf16.msra.mxu0 %v1537
      %1900 = vmatpush.bf16.msra.mxu0 %v1533
      %1901 = vmatpush.bf16.msra.mxu0 %v1529
      %1902 = vmatpush.bf16.msra.mxu0 %v1525
      %1903 = vmatmul.bf16.gmra.mxu0 %v639
      %v1904 = vpop.f32.mrf.mxu0
      %v1905 = vadd.f32 %v1886, %v1904
      %v1906 = vpop.f32.mrf.mxu0
      %v1907 = vadd.f32 %v1888, %v1906
      %1908 = vmatmul.bf16.gmra.mxu0 %v646
      %v1909 = vpop.f32.mrf.mxu0
      %v1910 = vadd.f32 %v1891, %v1909
      %v1911 = vpop.f32.mrf.mxu0
      %v1912 = vadd.f32 %v1893, %v1911
      %1913 = vdwg.mxu0
      %1914 = vmatpush.bf16.msra.mxu0 %v1362
      %1915 = vmatpush.bf16.msra.mxu0 %v1358
      %1916 = vmatpush.bf16.msra.mxu0 %v1354
      %1917 = vmatpush.bf16.msra.mxu0 %v1350
      %1918 = vmatpush.bf16.msra.mxu0 %v1346
      %1919 = vmatpush.bf16.msra.mxu0 %v1342
      %1920 = vmatpush.bf16.msra.mxu0 %v1338
      %1921 = vmatpush.bf16.msra.mxu0 %v1334
      %1922 = vmatmul.bf16.gmra.mxu0 %v633
      %v1923 = vpop.f32.mrf.mxu0
      %v1924 = vadd.f32 %v582, %v1923
      %v1925 = vpop.f32.mrf.mxu0
      %v1926 = vadd.f32 %v582, %v1925
      %1927 = vmatmul.bf16.gmra.mxu0 %v640
      %v1928 = vpop.f32.mrf.mxu0
      %v1929 = vadd.f32 %v582, %v1928
      %v1930 = vpop.f32.mrf.mxu0
      %v1931 = vadd.f32 %v582, %v1930
      %1932 = vdwg.mxu0
      %1933 = vmatpush.bf16.msra.mxu0 %v1394
      %1934 = vmatpush.bf16.msra.mxu0 %v1390
      %1935 = vmatpush.bf16.msra.mxu0 %v1386
      %1936 = vmatpush.bf16.msra.mxu0 %v1382
      %1937 = vmatpush.bf16.msra.mxu0 %v1378
      %1938 = vmatpush.bf16.msra.mxu0 %v1374
      %1939 = vmatpush.bf16.msra.mxu0 %v1370
      %1940 = vmatpush.bf16.msra.mxu0 %v1366
      %1941 = vmatmul.bf16.gmra.mxu0 %v634
      %v1942 = vpop.f32.mrf.mxu0
      %v1943 = vadd.f32 %v1924, %v1942
      %v1944 = vpop.f32.mrf.mxu0
      %v1945 = vadd.f32 %v1926, %v1944
      %1946 = vmatmul.bf16.gmra.mxu0 %v641
      %v1947 = vpop.f32.mrf.mxu0
      %v1948 = vadd.f32 %v1929, %v1947
      %v1949 = vpop.f32.mrf.mxu0
      %v1950 = vadd.f32 %v1931, %v1949
      %1951 = vdwg.mxu0
      %1952 = vmatpush.bf16.msra.mxu0 %v1426
      %1953 = vmatpush.bf16.msra.mxu0 %v1422
      %1954 = vmatpush.bf16.msra.mxu0 %v1418
      %1955 = vmatpush.bf16.msra.mxu0 %v1414
      %1956 = vmatpush.bf16.msra.mxu0 %v1410
      %1957 = vmatpush.bf16.msra.mxu0 %v1406
      %1958 = vmatpush.bf16.msra.mxu0 %v1402
      %1959 = vmatpush.bf16.msra.mxu0 %v1398
      %1960 = vmatmul.bf16.gmra.mxu0 %v635
      %v1961 = vpop.f32.mrf.mxu0
      %v1962 = vadd.f32 %v1943, %v1961
      %v1963 = vpop.f32.mrf.mxu0
      %v1964 = vadd.f32 %v1945, %v1963
      %1965 = vmatmul.bf16.gmra.mxu0 %v642
      %v1966 = vpop.f32.mrf.mxu0
      %v1967 = vadd.f32 %v1948, %v1966
      %v1968 = vpop.f32.mrf.mxu0
      %v1969 = vadd.f32 %v1950, %v1968
      %1970 = vdwg.mxu0
      %1971 = vmatpush.bf16.msra.mxu0 %v1458
      %1972 = vmatpush.bf16.msra.mxu0 %v1454
      %1973 = vmatpush.bf16.msra.mxu0 %v1450
      %1974 = vmatpush.bf16.msra.mxu0 %v1446
      %1975 = vmatpush.bf16.msra.mxu0 %v1442
      %1976 = vmatpush.bf16.msra.mxu0 %v1438
      %1977 = vmatpush.bf16.msra.mxu0 %v1434
      %1978 = vmatpush.bf16.msra.mxu0 %v1430
      %1979 = vmatmul.bf16.gmra.mxu0 %v636
      %v1980 = vpop.f32.mrf.mxu0
      %v1981 = vadd.f32 %v1962, %v1980
      %v1982 = vpop.f32.mrf.mxu0
      %v1983 = vadd.f32 %v1964, %v1982
      %1984 = vmatmul.bf16.gmra.mxu0 %v643
      %v1985 = vpop.f32.mrf.mxu0
      %v1986 = vadd.f32 %v1967, %v1985
      %v1987 = vpop.f32.mrf.mxu0
      %v1988 = vadd.f32 %v1969, %v1987
      %1989 = vdwg.mxu0
      %1990 = vmatpush.bf16.msra.mxu0 %v1490
      %1991 = vmatpush.bf16.msra.mxu0 %v1486
      %1992 = vmatpush.bf16.msra.mxu0 %v1482
      %1993 = vmatpush.bf16.msra.mxu0 %v1478
      %1994 = vmatpush.bf16.msra.mxu0 %v1474
      %1995 = vmatpush.bf16.msra.mxu0 %v1470
      %1996 = vmatpush.bf16.msra.mxu0 %v1466
      %1997 = vmatpush.bf16.msra.mxu0 %v1462
      %1998 = vmatmul.bf16.gmra.mxu0 %v637
      %v1999 = vpop.f32.mrf.mxu0
      %v2000 = vadd.f32 %v1981, %v1999
      %v2001 = vpop.f32.mrf.mxu0
      %v2002 = vadd.f32 %v1983, %v2001
      %2003 = vmatmul.bf16.gmra.mxu0 %v644
      %v2004 = vpop.f32.mrf.mxu0
      %v2005 = vadd.f32 %v1986, %v2004
      %v2006 = vpop.f32.mrf.mxu0
      %v2007 = vadd.f32 %v1988, %v2006
      %2008 = vdwg.mxu0
      %2009 = vmatpush.bf16.msra.mxu0 %v1522
      %2010 = vmatpush.bf16.msra.mxu0 %v1518
      %2011 = vmatpush.bf16.msra.mxu0 %v1514
      %2012 = vmatpush.bf16.msra.mxu0 %v1510
      %2013 = vmatpush.bf16.msra.mxu0 %v1506
      %2014 = vmatpush.bf16.msra.mxu0 %v1502
      %2015 = vmatpush.bf16.msra.mxu0 %v1498
      %2016 = vmatpush.bf16.msra.mxu0 %v1494
      %2017 = vmatmul.bf16.gmra.mxu0 %v638
      %v2018 = vpop.f32.mrf.mxu0
      %v2019 = vadd.f32 %v2000, %v2018
      %v2020 = vpop.f32.mrf.mxu0
      %v2021 = vadd.f32 %v2002, %v2020
      %2022 = vmatmul.bf16.gmra.mxu0 %v645
      %v2023 = vpop.f32.mrf.mxu0
      %v2024 = vadd.f32 %v2005, %v2023
      %v2025 = vpop.f32.mrf.mxu0
      %v2026 = vadd.f32 %v2007, %v2025
      %2027 = vdwg.mxu0
      %2028 = vmatpush.bf16.msra.mxu0 %v1554
      %2029 = vmatpush.bf16.msra.mxu0 %v1550
      %2030 = vmatpush.bf16.msra.mxu0 %v1546
      %2031 = vmatpush.bf16.msra.mxu0 %v1542
      %2032 = vmatpush.bf16.msra.mxu0 %v1538
      %2033 = vmatpush.bf16.msra.mxu0 %v1534
      %2034 = vmatpush.bf16.msra.mxu0 %v1530
      %2035 = vmatpush.bf16.msra.mxu0 %v1526
      %2036 = vmatmul.bf16.gmra.mxu0 %v639
      %v2037 = vpop.f32.mrf.mxu0
      %v2038 = vadd.f32 %v2019, %v2037
      %v2039 = vpop.f32.mrf.mxu0
      %v2040 = vadd.f32 %v2021, %v2039
      %2041 = vmatmul.bf16.gmra.mxu0 %v646
      %v2042 = vpop.f32.mrf.mxu0
      %v2043 = vadd.f32 %v2024, %v2042
      %v2044 = vpop.f32.mrf.mxu0
      %v2045 = vadd.f32 %v2026, %v2044
      %2046 = vdwg.mxu0
      %2047 = vmatpush.bf16.msra.mxu0 %v1363
      %2048 = vmatpush.bf16.msra.mxu0 %v1359
      %2049 = vmatpush.bf16.msra.mxu0 %v1355
      %2050 = vmatpush.bf16.msra.mxu0 %v1351
      %2051 = vmatpush.bf16.msra.mxu0 %v1347
      %2052 = vmatpush.bf16.msra.mxu0 %v1343
      %2053 = vmatpush.bf16.msra.mxu0 %v1339
      %2054 = vmatpush.bf16.msra.mxu0 %v1335
      %2055 = vmatmul.bf16.gmra.mxu0 %v633
      %v2056 = vpop.f32.mrf.mxu0
      %v2057 = vadd.f32 %v583, %v2056
      %v2058 = vpop.f32.mrf.mxu0
      %v2059 = vadd.f32 %v583, %v2058
      %2060 = vmatmul.bf16.gmra.mxu0 %v640
      %v2061 = vpop.f32.mrf.mxu0
      %v2062 = vadd.f32 %v583, %v2061
      %v2063 = vpop.f32.mrf.mxu0
      %v2064 = vadd.f32 %v583, %v2063
      %2065 = vdwg.mxu0
      %2066 = vmatpush.bf16.msra.mxu0 %v1395
      %2067 = vmatpush.bf16.msra.mxu0 %v1391
      %2068 = vmatpush.bf16.msra.mxu0 %v1387
      %2069 = vmatpush.bf16.msra.mxu0 %v1383
      %2070 = vmatpush.bf16.msra.mxu0 %v1379
      %2071 = vmatpush.bf16.msra.mxu0 %v1375
      %2072 = vmatpush.bf16.msra.mxu0 %v1371
      %2073 = vmatpush.bf16.msra.mxu0 %v1367
      %2074 = vmatmul.bf16.gmra.mxu0 %v634
      %v2075 = vpop.f32.mrf.mxu0
      %v2076 = vadd.f32 %v2057, %v2075
      %v2077 = vpop.f32.mrf.mxu0
      %v2078 = vadd.f32 %v2059, %v2077
      %2079 = vmatmul.bf16.gmra.mxu0 %v641
      %v2080 = vpop.f32.mrf.mxu0
      %v2081 = vadd.f32 %v2062, %v2080
      %v2082 = vpop.f32.mrf.mxu0
      %v2083 = vadd.f32 %v2064, %v2082
      %2084 = vdwg.mxu0
      %2085 = vmatpush.bf16.msra.mxu0 %v1427
      %2086 = vmatpush.bf16.msra.mxu0 %v1423
      %2087 = vmatpush.bf16.msra.mxu0 %v1419
      %2088 = vmatpush.bf16.msra.mxu0 %v1415
      %2089 = vmatpush.bf16.msra.mxu0 %v1411
      %2090 = vmatpush.bf16.msra.mxu0 %v1407
      %2091 = vmatpush.bf16.msra.mxu0 %v1403
      %2092 = vmatpush.bf16.msra.mxu0 %v1399
      %2093 = vmatmul.bf16.gmra.mxu0 %v635
      %v2094 = vpop.f32.mrf.mxu0
      %v2095 = vadd.f32 %v2076, %v2094
      %v2096 = vpop.f32.mrf.mxu0
      %v2097 = vadd.f32 %v2078, %v2096
      %2098 = vmatmul.bf16.gmra.mxu0 %v642
      %v2099 = vpop.f32.mrf.mxu0
      %v2100 = vadd.f32 %v2081, %v2099
      %v2101 = vpop.f32.mrf.mxu0
      %v2102 = vadd.f32 %v2083, %v2101
      %2103 = vdwg.mxu0
      %2104 = vmatpush.bf16.msra.mxu0 %v1459
      %2105 = vmatpush.bf16.msra.mxu0 %v1455
      %2106 = vmatpush.bf16.msra.mxu0 %v1451
      %2107 = vmatpush.bf16.msra.mxu0 %v1447
      %2108 = vmatpush.bf16.msra.mxu0 %v1443
      %2109 = vmatpush.bf16.msra.mxu0 %v1439
      %2110 = vmatpush.bf16.msra.mxu0 %v1435
      %2111 = vmatpush.bf16.msra.mxu0 %v1431
      %2112 = vmatmul.bf16.gmra.mxu0 %v636
      %v2113 = vpop.f32.mrf.mxu0
      %v2114 = vadd.f32 %v2095, %v2113
      %v2115 = vpop.f32.mrf.mxu0
      %v2116 = vadd.f32 %v2097, %v2115
      %2117 = vmatmul.bf16.gmra.mxu0 %v643
      %v2118 = vpop.f32.mrf.mxu0
      %v2119 = vadd.f32 %v2100, %v2118
      %v2120 = vpop.f32.mrf.mxu0
      %v2121 = vadd.f32 %v2102, %v2120
      %2122 = vdwg.mxu0
      %2123 = vmatpush.bf16.msra.mxu0 %v1491
      %2124 = vmatpush.bf16.msra.mxu0 %v1487
      %2125 = vmatpush.bf16.msra.mxu0 %v1483
      %2126 = vmatpush.bf16.msra.mxu0 %v1479
      %2127 = vmatpush.bf16.msra.mxu0 %v1475
      %2128 = vmatpush.bf16.msra.mxu0 %v1471
      %2129 = vmatpush.bf16.msra.mxu0 %v1467
      %2130 = vmatpush.bf16.msra.mxu0 %v1463
      %2131 = vmatmul.bf16.gmra.mxu0 %v637
      %v2132 = vpop.f32.mrf.mxu0
      %v2133 = vadd.f32 %v2114, %v2132
      %v2134 = vpop.f32.mrf.mxu0
      %v2135 = vadd.f32 %v2116, %v2134
      %2136 = vmatmul.bf16.gmra.mxu0 %v644
      %v2137 = vpop.f32.mrf.mxu0
      %v2138 = vadd.f32 %v2119, %v2137
      %v2139 = vpop.f32.mrf.mxu0
      %v2140 = vadd.f32 %v2121, %v2139
      %2141 = vdwg.mxu0
      %2142 = vmatpush.bf16.msra.mxu0 %v1523
      %2143 = vmatpush.bf16.msra.mxu0 %v1519
      %2144 = vmatpush.bf16.msra.mxu0 %v1515
      %2145 = vmatpush.bf16.msra.mxu0 %v1511
      %2146 = vmatpush.bf16.msra.mxu0 %v1507
      %2147 = vmatpush.bf16.msra.mxu0 %v1503
      %2148 = vmatpush.bf16.msra.mxu0 %v1499
      %2149 = vmatpush.bf16.msra.mxu0 %v1495
      %2150 = vmatmul.bf16.gmra.mxu0 %v638
      %v2151 = vpop.f32.mrf.mxu0
      %v2152 = vadd.f32 %v2133, %v2151
      %v2153 = vpop.f32.mrf.mxu0
      %v2154 = vadd.f32 %v2135, %v2153
      %2155 = vmatmul.bf16.gmra.mxu0 %v645
      %v2156 = vpop.f32.mrf.mxu0
      %v2157 = vadd.f32 %v2138, %v2156
      %v2158 = vpop.f32.mrf.mxu0
      %v2159 = vadd.f32 %v2140, %v2158
      %2160 = vdwg.mxu0
      %2161 = vmatpush.bf16.msra.mxu0 %v1555
      %2162 = vmatpush.bf16.msra.mxu0 %v1551
      %2163 = vmatpush.bf16.msra.mxu0 %v1547
      %2164 = vmatpush.bf16.msra.mxu0 %v1543
      %2165 = vmatpush.bf16.msra.mxu0 %v1539
      %2166 = vmatpush.bf16.msra.mxu0 %v1535
      %2167 = vmatpush.bf16.msra.mxu0 %v1531
      %2168 = vmatpush.bf16.msra.mxu0 %v1527
      %2169 = vmatmul.bf16.gmra.mxu0 %v639
      %v2170 = vpop.f32.mrf.mxu0
      %v2171 = vadd.f32 %v2152, %v2170
      %v2172 = vpop.f32.mrf.mxu0
      %v2173 = vadd.f32 %v2154, %v2172
      %2174 = vmatmul.bf16.gmra.mxu0 %v646
      %v2175 = vpop.f32.mrf.mxu0
      %v2176 = vadd.f32 %v2157, %v2175
      %v2177 = vpop.f32.mrf.mxu0
      %v2178 = vadd.f32 %v2159, %v2177
      %2179 = vdwg.mxu0
      %2180 = vmatpush.bf16.msra.mxu0 %v1364
      %2181 = vmatpush.bf16.msra.mxu0 %v1360
      %2182 = vmatpush.bf16.msra.mxu0 %v1356
      %2183 = vmatpush.bf16.msra.mxu0 %v1352
      %2184 = vmatpush.bf16.msra.mxu0 %v1348
      %2185 = vmatpush.bf16.msra.mxu0 %v1344
      %2186 = vmatpush.bf16.msra.mxu0 %v1340
      %2187 = vmatpush.bf16.msra.mxu0 %v1336
      %2188 = vmatmul.bf16.gmra.mxu0 %v633
      %v2189 = vpop.f32.mrf.mxu0
      %v2190 = vadd.f32 %v584, %v2189
      %v2191 = vpop.f32.mrf.mxu0
      %v2192 = vadd.f32 %v584, %v2191
      %2193 = vmatmul.bf16.gmra.mxu0 %v640
      %v2194 = vpop.f32.mrf.mxu0
      %v2195 = vadd.f32 %v584, %v2194
      %v2196 = vpop.f32.mrf.mxu0
      %v2197 = vadd.f32 %v584, %v2196
      %2198 = vdwg.mxu0
      %2199 = vmatpush.bf16.msra.mxu0 %v1396
      %2200 = vmatpush.bf16.msra.mxu0 %v1392
      %2201 = vmatpush.bf16.msra.mxu0 %v1388
      %2202 = vmatpush.bf16.msra.mxu0 %v1384
      %2203 = vmatpush.bf16.msra.mxu0 %v1380
      %2204 = vmatpush.bf16.msra.mxu0 %v1376
      %2205 = vmatpush.bf16.msra.mxu0 %v1372
      %2206 = vmatpush.bf16.msra.mxu0 %v1368
      %2207 = vmatmul.bf16.gmra.mxu0 %v634
      %v2208 = vpop.f32.mrf.mxu0
      %v2209 = vadd.f32 %v2190, %v2208
      %v2210 = vpop.f32.mrf.mxu0
      %v2211 = vadd.f32 %v2192, %v2210
      %2212 = vmatmul.bf16.gmra.mxu0 %v641
      %v2213 = vpop.f32.mrf.mxu0
      %v2214 = vadd.f32 %v2195, %v2213
      %v2215 = vpop.f32.mrf.mxu0
      %v2216 = vadd.f32 %v2197, %v2215
      %2217 = vdwg.mxu0
      %2218 = vmatpush.bf16.msra.mxu0 %v1428
      %2219 = vmatpush.bf16.msra.mxu0 %v1424
      %2220 = vmatpush.bf16.msra.mxu0 %v1420
      %2221 = vmatpush.bf16.msra.mxu0 %v1416
      %2222 = vmatpush.bf16.msra.mxu0 %v1412
      %2223 = vmatpush.bf16.msra.mxu0 %v1408
      %2224 = vmatpush.bf16.msra.mxu0 %v1404
      %2225 = vmatpush.bf16.msra.mxu0 %v1400
      %2226 = vmatmul.bf16.gmra.mxu0 %v635
      %v2227 = vpop.f32.mrf.mxu0
      %v2228 = vadd.f32 %v2209, %v2227
      %v2229 = vpop.f32.mrf.mxu0
      %v2230 = vadd.f32 %v2211, %v2229
      %2231 = vmatmul.bf16.gmra.mxu0 %v642
      %v2232 = vpop.f32.mrf.mxu0
      %v2233 = vadd.f32 %v2214, %v2232
      %v2234 = vpop.f32.mrf.mxu0
      %v2235 = vadd.f32 %v2216, %v2234
      %2236 = vdwg.mxu0
      %2237 = vmatpush.bf16.msra.mxu0 %v1460
      %2238 = vmatpush.bf16.msra.mxu0 %v1456
      %2239 = vmatpush.bf16.msra.mxu0 %v1452
      %2240 = vmatpush.bf16.msra.mxu0 %v1448
      %2241 = vmatpush.bf16.msra.mxu0 %v1444
      %2242 = vmatpush.bf16.msra.mxu0 %v1440
      %2243 = vmatpush.bf16.msra.mxu0 %v1436
      %2244 = vmatpush.bf16.msra.mxu0 %v1432
      %2245 = vmatmul.bf16.gmra.mxu0 %v636
      %v2246 = vpop.f32.mrf.mxu0
      %v2247 = vadd.f32 %v2228, %v2246
      %v2248 = vpop.f32.mrf.mxu0
      %v2249 = vadd.f32 %v2230, %v2248
      %2250 = vmatmul.bf16.gmra.mxu0 %v643
      %v2251 = vpop.f32.mrf.mxu0
      %v2252 = vadd.f32 %v2233, %v2251
      %v2253 = vpop.f32.mrf.mxu0
      %v2254 = vadd.f32 %v2235, %v2253
      %2255 = vdwg.mxu0
      %2256 = vmatpush.bf16.msra.mxu0 %v1492
      %2257 = vmatpush.bf16.msra.mxu0 %v1488
      %2258 = vmatpush.bf16.msra.mxu0 %v1484
      %2259 = vmatpush.bf16.msra.mxu0 %v1480
      %2260 = vmatpush.bf16.msra.mxu0 %v1476
      %2261 = vmatpush.bf16.msra.mxu0 %v1472
      %2262 = vmatpush.bf16.msra.mxu0 %v1468
      %2263 = vmatpush.bf16.msra.mxu0 %v1464
      %2264 = vmatmul.bf16.gmra.mxu0 %v637
      %v2265 = vpop.f32.mrf.mxu0
      %v2266 = vadd.f32 %v2247, %v2265
      %v2267 = vpop.f32.mrf.mxu0
      %v2268 = vadd.f32 %v2249, %v2267
      %2269 = vmatmul.bf16.gmra.mxu0 %v644
      %v2270 = vpop.f32.mrf.mxu0
      %v2271 = vadd.f32 %v2252, %v2270
      %v2272 = vpop.f32.mrf.mxu0
      %v2273 = vadd.f32 %v2254, %v2272
      %2274 = vdwg.mxu0
      %2275 = vmatpush.bf16.msra.mxu0 %v1524
      %2276 = vmatpush.bf16.msra.mxu0 %v1520
      %2277 = vmatpush.bf16.msra.mxu0 %v1516
      %2278 = vmatpush.bf16.msra.mxu0 %v1512
      %2279 = vmatpush.bf16.msra.mxu0 %v1508
      %2280 = vmatpush.bf16.msra.mxu0 %v1504
      %2281 = vmatpush.bf16.msra.mxu0 %v1500
      %2282 = vmatpush.bf16.msra.mxu0 %v1496
      %2283 = vmatmul.bf16.gmra.mxu0 %v638
      %v2284 = vpop.f32.mrf.mxu0
      %v2285 = vadd.f32 %v2266, %v2284
      %v2286 = vpop.f32.mrf.mxu0
      %v2287 = vadd.f32 %v2268, %v2286
      %2288 = vmatmul.bf16.gmra.mxu0 %v645
      %v2289 = vpop.f32.mrf.mxu0
      %v2290 = vadd.f32 %v2271, %v2289
      %v2291 = vpop.f32.mrf.mxu0
      %v2292 = vadd.f32 %v2273, %v2291
      %2293 = vdwg.mxu0
      %2294 = vmatpush.bf16.msra.mxu0 %v1556
      %2295 = vmatpush.bf16.msra.mxu0 %v1552
      %2296 = vmatpush.bf16.msra.mxu0 %v1548
      %2297 = vmatpush.bf16.msra.mxu0 %v1544
      %2298 = vmatpush.bf16.msra.mxu0 %v1540
      %2299 = vmatpush.bf16.msra.mxu0 %v1536
      %2300 = vmatpush.bf16.msra.mxu0 %v1532
      %2301 = vmatpush.bf16.msra.mxu0 %v1528
      %2302 = vmatmul.bf16.gmra.mxu0 %v639
      %v2303 = vpop.f32.mrf.mxu0
      %v2304 = vadd.f32 %v2285, %v2303
      %v2305 = vpop.f32.mrf.mxu0
      %v2306 = vadd.f32 %v2287, %v2305
      %2307 = vmatmul.bf16.gmra.mxu0 %v646
      %v2308 = vpop.f32.mrf.mxu0
      %v2309 = vadd.f32 %v2290, %v2308
      %v2310 = vpop.f32.mrf.mxu0
      %v2311 = vadd.f32 %v2292, %v2310
      %2312 = vdwg.mxu0
      %v2313 = vmul.f32 %v1905, 0.2
      %v2314 = vmul.f32 %v2038, 0.2
      %v2315 = vmul.f32 %v2171, 0.2
      %v2316 = vmul.f32 %v2304, 0.2
      %v2317 = vmul.f32 %v1907, 0.2
      %v2318 = vmul.f32 %v2040, 0.2
      %v2319 = vmul.f32 %v2173, 0.2
      %v2320 = vmul.f32 %v2306, 0.2
      %v2321 = vmul.f32 %v1910, 0.2
      %v2322 = vmul.f32 %v2043, 0.2
      %v2323 = vmul.f32 %v2176, 0.2
      %v2324 = vmul.f32 %v2309, 0.2
      %v2325 = vmul.f32 %v1912, 0.2
      %v2326 = vmul.f32 %v2045, 0.2
      %v2327 = vmul.f32 %v2178, 0.2
      %v2328 = vmul.f32 %v2311, 0.2
      %v2329 = vmax.f32 %v1905, %v2313
      %v2330 = vmax.f32 %v2038, %v2314
      %v2331 = vmax.f32 %v2171, %v2315
      %v2332 = vmax.f32 %v2304, %v2316
      %v2333 = vmax.f32 %v1907, %v2317
      %v2334 = vmax.f32 %v2040, %v2318
      %v2335 = vmax.f32 %v2173, %v2319
      %v2336 = vmax.f32 %v2306, %v2320
      %v2337 = vmax.f32 %v1910, %v2321
      %v2338 = vmax.f32 %v2043, %v2322
      %v2339 = vmax.f32 %v2176, %v2323
      %v2340 = vmax.f32 %v2309, %v2324
      %v2341 = vmax.f32 %v1912, %v2325
      %v2342 = vmax.f32 %v2045, %v2326
      %v2343 = vmax.f32 %v2178, %v2327
      %v2344 = vmax.f32 %v2311, %v2328
      %v2345 = vpack.c.bf16 %v2333, %v2329
      %v2346 = vpack.c.bf16 %v2334, %v2330
      %v2347 = vpack.c.bf16 %v2335, %v2331
      %v2348 = vpack.c.bf16 %v2336, %v2332
      %v2349 = vpack.c.bf16 %v2341, %v2337
      %v2350 = vpack.c.bf16 %v2342, %v2338
      %v2351 = vpack.c.bf16 %v2343, %v2339
      %v2352 = vpack.c.bf16 %v2344, %v2340
      %v2353 = vld [vmem:[%s3] sm:$0xff]
      %v2354 = vld [vmem:[%s3 + $0x8] sm:$0xff]
      %v2355 = vld [vmem:[%s3 + $0x10] sm:$0xff]
      %v2356 = vld [vmem:[%s3 + $0x18] sm:$0xff]
      %v2357 = vld [vmem:[%s3 + $0x20] sm:$0xff]
      %v2358 = vld [vmem:[%s3 + $0x28] sm:$0xff]
      %v2359 = vld [vmem:[%s3 + $0x30] sm:$0xff]
      %v2360 = vld [vmem:[%s3 + $0x38] sm:$0xff]
      %v2361 = vld [vmem:[%s3 + $0x40] sm:$0xff]
      %v2362 = vld [vmem:[%s3 + $0x48] sm:$0xff]
      %v2363 = vld [vmem:[%s3 + $0x50] sm:$0xff]
      %v2364 = vld [vmem:[%s3 + $0x58] sm:$0xff]
      %v2365 = vld [vmem:[%s3 + $0x60] sm:$0xff]
      %v2366 = vld [vmem:[%s3 + $0x68] sm:$0xff]
      %v2367 = vld [vmem:[%s3 + $0x70] sm:$0xff]
      %v2368 = vld [vmem:[%s3 + $0x78] sm:$0xff]
      %v2369 = vld [vmem:[%s3 + $0x80] sm:$0xff]
      %v2370 = vld [vmem:[%s3 + $0x88] sm:$0xff]
      %v2371 = vld [vmem:[%s3 + $0x90] sm:$0xff]
      %v2372 = vld [vmem:[%s3 + $0x98] sm:$0xff]
      %v2373 = vld [vmem:[%s3 + $0xa0] sm:$0xff]
      %v2374 = vld [vmem:[%s3 + $0xa8] sm:$0xff]
      %v2375 = vld [vmem:[%s3 + $0xb0] sm:$0xff]
      %v2376 = vld [vmem:[%s3 + $0xb8] sm:$0xff]
      %v2377 = vld [vmem:[%s3 + $0xc0] sm:$0xff]
      %v2378 = vld [vmem:[%s3 + $0xc8] sm:$0xff]
      %v2379 = vld [vmem:[%s3 + $0xd0] sm:$0xff]
      %v2380 = vld [vmem:[%s3 + $0xd8] sm:$0xff]
      %v2381 = vld [vmem:[%s3 + $0xe0] sm:$0xff]
      %v2382 = vld [vmem:[%s3 + $0xe8] sm:$0xff]
      %v2383 = vld [vmem:[%s3 + $0xf0] sm:$0xff]
      %v2384 = vld [vmem:[%s3 + $0xf8] sm:$0xff]
      %v2385 = vld [vmem:[%s3 + $0x100] sm:$0xff]
      %v2386 = vld [vmem:[%s3 + $0x108] sm:$0xff]
      %v2387 = vld [vmem:[%s3 + $0x110] sm:$0xff]
      %v2388 = vld [vmem:[%s3 + $0x118] sm:$0xff]
      %v2389 = vld [vmem:[%s3 + $0x120] sm:$0xff]
      %v2390 = vld [vmem:[%s3 + $0x128] sm:$0xff]
      %v2391 = vld [vmem:[%s3 + $0x130] sm:$0xff]
      %v2392 = vld [vmem:[%s3 + $0x138] sm:$0xff]
      %v2393 = vld [vmem:[%s3 + $0x140] sm:$0xff]
      %v2394 = vld [vmem:[%s3 + $0x148] sm:$0xff]
      %v2395 = vld [vmem:[%s3 + $0x150] sm:$0xff]
      %v2396 = vld [vmem:[%s3 + $0x158] sm:$0xff]
      %v2397 = vld [vmem:[%s3 + $0x160] sm:$0xff]
      %v2398 = vld [vmem:[%s3 + $0x168] sm:$0xff]
      %v2399 = vld [vmem:[%s3 + $0x170] sm:$0xff]
      %v2400 = vld [vmem:[%s3 + $0x178] sm:$0xff]
      %v2401 = vld [vmem:[%s3 + $0x180] sm:$0xff]
      %v2402 = vld [vmem:[%s3 + $0x188] sm:$0xff]
      %v2403 = vld [vmem:[%s3 + $0x190] sm:$0xff]
      %v2404 = vld [vmem:[%s3 + $0x198] sm:$0xff]
      %v2405 = vld [vmem:[%s3 + $0x1a0] sm:$0xff]
      %v2406 = vld [vmem:[%s3 + $0x1a8] sm:$0xff]
      %v2407 = vld [vmem:[%s3 + $0x1b0] sm:$0xff]
      %v2408 = vld [vmem:[%s3 + $0x1b8] sm:$0xff]
      %v2409 = vld [vmem:[%s3 + $0x1c0] sm:$0xff]
      %v2410 = vld [vmem:[%s3 + $0x1c8] sm:$0xff]
      %v2411 = vld [vmem:[%s3 + $0x1d0] sm:$0xff]
      %v2412 = vld [vmem:[%s3 + $0x1d8] sm:$0xff]
      %v2413 = vld [vmem:[%s3 + $0x1e0] sm:$0xff]
      %v2414 = vld [vmem:[%s3 + $0x1e8] sm:$0xff]
      %v2415 = vld [vmem:[%s3 + $0x1f0] sm:$0xff]
      %v2416 = vld [vmem:[%s3 + $0x1f8] sm:$0xff]
      %v2417 = vld [vmem:[%s4] sm:$0x3]
      %v2419 = vperm.slane %v2417, 0
      %v2420 = vperm.slane %v2417, 1
      %v2487 = vunpack.c.l.b16 %v2353
      %v2488 = vunpack.c.h.b16 %v2353
      %v2489 = vunpack.c.l.b16 %v2354
      %v2490 = vunpack.c.h.b16 %v2354
      %v2491 = vunpack.c.l.b16 %v2355
      %v2492 = vunpack.c.h.b16 %v2355
      %v2493 = vunpack.c.l.b16 %v2356
      %v2494 = vunpack.c.h.b16 %v2356
      %v2495 = vunpack.c.l.b16 %v2357
      %v2496 = vunpack.c.h.b16 %v2357
      %v2497 = vunpack.c.l.b16 %v2358
      %v2498 = vunpack.c.h.b16 %v2358
      %v2499 = vunpack.c.l.b16 %v2359
      %v2500 = vunpack.c.h.b16 %v2359
      %v2501 = vunpack.c.l.b16 %v2360
      %v2502 = vunpack.c.h.b16 %v2360
      %v2503 = vunpack.c.l.b16 %v2361
      %v2504 = vunpack.c.h.b16 %v2361
      %v2505 = vunpack.c.l.b16 %v2362
      %v2506 = vunpack.c.h.b16 %v2362
      %v2507 = vunpack.c.l.b16 %v2363
      %v2508 = vunpack.c.h.b16 %v2363
      %v2509 = vunpack.c.l.b16 %v2364
      %v2510 = vunpack.c.h.b16 %v2364
      %v2511 = vunpack.c.l.b16 %v2365
      %v2512 = vunpack.c.h.b16 %v2365
      %v2513 = vunpack.c.l.b16 %v2366
      %v2514 = vunpack.c.h.b16 %v2366
      %v2515 = vunpack.c.l.b16 %v2367
      %v2516 = vunpack.c.h.b16 %v2367
      %v2517 = vunpack.c.l.b16 %v2368
      %v2518 = vunpack.c.h.b16 %v2368
      %v2519 = vunpack.c.l.b16 %v2369
      %v2520 = vunpack.c.h.b16 %v2369
      %v2521 = vunpack.c.l.b16 %v2370
      %v2522 = vunpack.c.h.b16 %v2370
      %v2523 = vunpack.c.l.b16 %v2371
      %v2524 = vunpack.c.h.b16 %v2371
      %v2525 = vunpack.c.l.b16 %v2372
      %v2526 = vunpack.c.h.b16 %v2372
      %v2527 = vunpack.c.l.b16 %v2373
      %v2528 = vunpack.c.h.b16 %v2373
      %v2529 = vunpack.c.l.b16 %v2374
      %v2530 = vunpack.c.h.b16 %v2374
      %v2531 = vunpack.c.l.b16 %v2375
      %v2532 = vunpack.c.h.b16 %v2375
      %v2533 = vunpack.c.l.b16 %v2376
      %v2534 = vunpack.c.h.b16 %v2376
      %v2535 = vunpack.c.l.b16 %v2377
      %v2536 = vunpack.c.h.b16 %v2377
      %v2537 = vunpack.c.l.b16 %v2378
      %v2538 = vunpack.c.h.b16 %v2378
      %v2539 = vunpack.c.l.b16 %v2379
      %v2540 = vunpack.c.h.b16 %v2379
      %v2541 = vunpack.c.l.b16 %v2380
      %v2542 = vunpack.c.h.b16 %v2380
      %v2543 = vunpack.c.l.b16 %v2381
      %v2544 = vunpack.c.h.b16 %v2381
      %v2545 = vunpack.c.l.b16 %v2382
      %v2546 = vunpack.c.h.b16 %v2382
      %v2547 = vunpack.c.l.b16 %v2383
      %v2548 = vunpack.c.h.b16 %v2383
      %v2549 = vunpack.c.l.b16 %v2384
      %v2550 = vunpack.c.h.b16 %v2384
      %v2551 = vunpack.c.l.b16 %v2385
      %v2552 = vunpack.c.h.b16 %v2385
      %v2553 = vunpack.c.l.b16 %v2386
      %v2554 = vunpack.c.h.b16 %v2386
      %v2555 = vunpack.c.l.b16 %v2387
      %v2556 = vunpack.c.h.b16 %v2387
      %v2557 = vunpack.c.l.b16 %v2388
      %v2558 = vunpack.c.h.b16 %v2388
      %v2559 = vunpack.c.l.b16 %v2389
      %v2560 = vunpack.c.h.b16 %v2389
      %v2561 = vunpack.c.l.b16 %v2390
      %v2562 = vunpack.c.h.b16 %v2390
      %v2563 = vunpack.c.l.b16 %v2391
      %v2564 = vunpack.c.h.b16 %v2391
      %v2565 = vunpack.c.l.b16 %v2392
      %v2566 = vunpack.c.h.b16 %v2392
      %v2567 = vunpack.c.l.b16 %v2393
      %v2568 = vunpack.c.h.b16 %v2393
      %v2569 = vunpack.c.l.b16 %v2394
      %v2570 = vunpack.c.h.b16 %v2394
      %v2571 = vunpack.c.l.b16 %v2395
      %v2572 = vunpack.c.h.b16 %v2395
      %v2573 = vunpack.c.l.b16 %v2396
      %v2574 = vunpack.c.h.b16 %v2396
      %v2575 = vunpack.c.l.b16 %v2397
      %v2576 = vunpack.c.h.b16 %v2397
      %v2577 = vunpack.c.l.b16 %v2398
      %v2578 = vunpack.c.h.b16 %v2398
      %v2579 = vunpack.c.l.b16 %v2399
      %v2580 = vunpack.c.h.b16 %v2399
      %v2581 = vunpack.c.l.b16 %v2400
      %v2582 = vunpack.c.h.b16 %v2400
      %v2583 = vunpack.c.l.b16 %v2401
      %v2584 = vunpack.c.h.b16 %v2401
      %v2585 = vunpack.c.l.b16 %v2402
      %v2586 = vunpack.c.h.b16 %v2402
      %v2587 = vunpack.c.l.b16 %v2403
      %v2588 = vunpack.c.h.b16 %v2403
      %v2589 = vunpack.c.l.b16 %v2404
      %v2590 = vunpack.c.h.b16 %v2404
      %v2591 = vunpack.c.l.b16 %v2405
      %v2592 = vunpack.c.h.b16 %v2405
      %v2593 = vunpack.c.l.b16 %v2406
      %v2594 = vunpack.c.h.b16 %v2406
      %v2595 = vunpack.c.l.b16 %v2407
      %v2596 = vunpack.c.h.b16 %v2407
      %v2597 = vunpack.c.l.b16 %v2408
      %v2598 = vunpack.c.h.b16 %v2408
      %v2599 = vunpack.c.l.b16 %v2409
      %v2600 = vunpack.c.h.b16 %v2409
      %v2601 = vunpack.c.l.b16 %v2410
      %v2602 = vunpack.c.h.b16 %v2410
      %v2603 = vunpack.c.l.b16 %v2411
      %v2604 = vunpack.c.h.b16 %v2411
      %v2605 = vunpack.c.l.b16 %v2412
      %v2606 = vunpack.c.h.b16 %v2412
      %v2607 = vunpack.c.l.b16 %v2413
      %v2608 = vunpack.c.h.b16 %v2413
      %v2609 = vunpack.c.l.b16 %v2414
      %v2610 = vunpack.c.h.b16 %v2414
      %v2611 = vunpack.c.l.b16 %v2415
      %v2612 = vunpack.c.h.b16 %v2415
      %v2613 = vunpack.c.l.b16 %v2416
      %v2614 = vunpack.c.h.b16 %v2416
      %v2615 = vpack.c.b16 %v2489, %v2487
      %v2616 = vpack.c.b16 %v2490, %v2488
      %v2617 = vpack.c.b16 %v2493, %v2491
      %v2618 = vpack.c.b16 %v2494, %v2492
      %v2619 = vpack.c.b16 %v2497, %v2495
      %v2620 = vpack.c.b16 %v2498, %v2496
      %v2621 = vpack.c.b16 %v2501, %v2499
      %v2622 = vpack.c.b16 %v2502, %v2500
      %v2623 = vpack.c.b16 %v2505, %v2503
      %v2624 = vpack.c.b16 %v2506, %v2504
      %v2625 = vpack.c.b16 %v2509, %v2507
      %v2626 = vpack.c.b16 %v2510, %v2508
      %v2627 = vpack.c.b16 %v2513, %v2511
      %v2628 = vpack.c.b16 %v2514, %v2512
      %v2629 = vpack.c.b16 %v2517, %v2515
      %v2630 = vpack.c.b16 %v2518, %v2516
      %v2631 = vpack.c.b16 %v2521, %v2519
      %v2632 = vpack.c.b16 %v2522, %v2520
      %v2633 = vpack.c.b16 %v2525, %v2523
      %v2634 = vpack.c.b16 %v2526, %v2524
      %v2635 = vpack.c.b16 %v2529, %v2527
      %v2636 = vpack.c.b16 %v2530, %v2528
      %v2637 = vpack.c.b16 %v2533, %v2531
      %v2638 = vpack.c.b16 %v2534, %v2532
      %v2639 = vpack.c.b16 %v2537, %v2535
      %v2640 = vpack.c.b16 %v2538, %v2536
      %v2641 = vpack.c.b16 %v2541, %v2539
      %v2642 = vpack.c.b16 %v2542, %v2540
      %v2643 = vpack.c.b16 %v2545, %v2543
      %v2644 = vpack.c.b16 %v2546, %v2544
      %v2645 = vpack.c.b16 %v2549, %v2547
      %v2646 = vpack.c.b16 %v2550, %v2548
      %v2647 = vpack.c.b16 %v2553, %v2551
      %v2648 = vpack.c.b16 %v2554, %v2552
      %v2649 = vpack.c.b16 %v2557, %v2555
      %v2650 = vpack.c.b16 %v2558, %v2556
      %v2651 = vpack.c.b16 %v2561, %v2559
      %v2652 = vpack.c.b16 %v2562, %v2560
      %v2653 = vpack.c.b16 %v2565, %v2563
      %v2654 = vpack.c.b16 %v2566, %v2564
      %v2655 = vpack.c.b16 %v2569, %v2567
      %v2656 = vpack.c.b16 %v2570, %v2568
      %v2657 = vpack.c.b16 %v2573, %v2571
      %v2658 = vpack.c.b16 %v2574, %v2572
      %v2659 = vpack.c.b16 %v2577, %v2575
      %v2660 = vpack.c.b16 %v2578, %v2576
      %v2661 = vpack.c.b16 %v2581, %v2579
      %v2662 = vpack.c.b16 %v2582, %v2580
      %v2663 = vpack.c.b16 %v2585, %v2583
      %v2664 = vpack.c.b16 %v2586, %v2584
      %v2665 = vpack.c.b16 %v2589, %v2587
      %v2666 = vpack.c.b16 %v2590, %v2588
      %v2667 = vpack.c.b16 %v2593, %v2591
      %v2668 = vpack.c.b16 %v2594, %v2592
      %v2669 = vpack.c.b16 %v2597, %v2595
      %v2670 = vpack.c.b16 %v2598, %v2596
      %v2671 = vpack.c.b16 %v2601, %v2599
      %v2672 = vpack.c.b16 %v2602, %v2600
      %v2673 = vpack.c.b16 %v2605, %v2603
      %v2674 = vpack.c.b16 %v2606, %v2604
      %v2675 = vpack.c.b16 %v2609, %v2607
      %v2676 = vpack.c.b16 %v2610, %v2608
      %v2677 = vpack.c.b16 %v2613, %v2611
      %v2678 = vpack.c.b16 %v2614, %v2612
      %2743 = vmatpush.bf16.msra.mxu0 %v2629
      %2744 = vmatpush.bf16.msra.mxu0 %v2627
      %2745 = vmatpush.bf16.msra.mxu0 %v2625
      %2746 = vmatpush.bf16.msra.mxu0 %v2623
      %2747 = vmatpush.bf16.msra.mxu0 %v2621
      %2748 = vmatpush.bf16.msra.mxu0 %v2619
      %2749 = vmatpush.bf16.msra.mxu0 %v2617
      %2750 = vmatpush.bf16.msra.mxu0 %v2615
      %2751 = vmatmul.bf16.gmra.mxu0 %v2345
      %v2752 = vpop.f32.mrf.mxu0
      %v2753 = vadd.f32 %v2419, %v2752
      %v2754 = vpop.f32.mrf.mxu0
      %v2755 = vadd.f32 %v2419, %v2754
      %2756 = vmatmul.bf16.gmra.mxu0 %v2349
      %v2757 = vpop.f32.mrf.mxu0
      %v2758 = vadd.f32 %v2419, %v2757
      %v2759 = vpop.f32.mrf.mxu0
      %v2760 = vadd.f32 %v2419, %v2759
      %2761 = vdwg.mxu0
      %2762 = vmatpush.bf16.msra.mxu0 %v2645
      %2763 = vmatpush.bf16.msra.mxu0 %v2643
      %2764 = vmatpush.bf16.msra.mxu0 %v2641
      %2765 = vmatpush.bf16.msra.mxu0 %v2639
      %2766 = vmatpush.bf16.msra.mxu0 %v2637
      %2767 = vmatpush.bf16.msra.mxu0 %v2635
      %2768 = vmatpush.bf16.msra.mxu0 %v2633
      %2769 = vmatpush.bf16.msra.mxu0 %v2631
      %2770 = vmatmul.bf16.gmra.mxu0 %v2346
      %v2771 = vpop.f32.mrf.mxu0
      %v2772 = vadd.f32 %v2753, %v2771
      %v2773 = vpop.f32.mrf.mxu0
      %v2774 = vadd.f32 %v2755, %v2773
      %2775 = vmatmul.bf16.gmra.mxu0 %v2350
      %v2776 = vpop.f32.mrf.mxu0
      %v2777 = vadd.f32 %v2758, %v2776
      %v2778 = vpop.f32.mrf.mxu0
      %v2779 = vadd.f32 %v2760, %v2778
      %2780 = vdwg.mxu0
      %2781 = vmatpush.bf16.msra.mxu0 %v2661
      %2782 = vmatpush.bf16.msra.mxu0 %v2659
      %2783 = vmatpush.bf16.msra.mxu0 %v2657
      %2784 = vmatpush.bf16.msra.mxu0 %v2655
      %2785 = vmatpush.bf16.msra.mxu0 %v2653
      %2786 = vmatpush.bf16.msra.mxu0 %v2651
      %2787 = vmatpush.bf16.msra.mxu0 %v2649
      %2788 = vmatpush.bf16.msra.mxu0 %v2647
      %2789 = vmatmul.bf16.gmra.mxu0 %v2347
      %v2790 = vpop.f32.mrf.mxu0
      %v2791 = vadd.f32 %v2772, %v2790
      %v2792 = vpop.f32.mrf.mxu0
      %v2793 = vadd.f32 %v2774, %v2792
      %2794 = vmatmul.bf16.gmra.mxu0 %v2351
      %v2795 = vpop.f32.mrf.mxu0
      %v2796 = vadd.f32 %v2777, %v2795
      %v2797 = vpop.f32.mrf.mxu0
      %v2798 = vadd.f32 %v2779, %v2797
      %2799 = vdwg.mxu0
      %2800 = vmatpush.bf16.msra.mxu0 %v2677
      %2801 = vmatpush.bf16.msra.mxu0 %v2675
      %2802 = vmatpush.bf16.msra.mxu0 %v2673
      %2803 = vmatpush.bf16.msra.mxu0 %v2671
      %2804 = vmatpush.bf16.msra.mxu0 %v2669
      %2805 = vmatpush.bf16.msra.mxu0 %v2667
      %2806 = vmatpush.bf16.msra.mxu0 %v2665
      %2807 = vmatpush.bf16.msra.mxu0 %v2663
      %2808 = vmatmul.bf16.gmra.mxu0 %v2348
      %v2809 = vpop.f32.mrf.mxu0
      %v2810 = vadd.f32 %v2791, %v2809
      %v2811 = vpop.f32.mrf.mxu0
      %v2812 = vadd.f32 %v2793, %v2811
      %2813 = vmatmul.bf16.gmra.mxu0 %v2352
      %v2814 = vpop.f32.mrf.mxu0
      %v2815 = vadd.f32 %v2796, %v2814
      %v2816 = vpop.f32.mrf.mxu0
      %v2817 = vadd.f32 %v2798, %v2816
      %2818 = vdwg.mxu0
      %2819 = vmatpush.bf16.msra.mxu0 %v2630
      %2820 = vmatpush.bf16.msra.mxu0 %v2628
      %2821 = vmatpush.bf16.msra.mxu0 %v2626
      %2822 = vmatpush.bf16.msra.mxu0 %v2624
      %2823 = vmatpush.bf16.msra.mxu0 %v2622
      %2824 = vmatpush.bf16.msra.mxu0 %v2620
      %2825 = vmatpush.bf16.msra.mxu0 %v2618
      %2826 = vmatpush.bf16.msra.mxu0 %v2616
      %2827 = vmatmul.bf16.gmra.mxu0 %v2345
      %v2828 = vpop.f32.mrf.mxu0
      %v2829 = vadd.f32 %v2420, %v2828
      %v2830 = vpop.f32.mrf.mxu0
      %v2831 = vadd.f32 %v2420, %v2830
      %2832 = vmatmul.bf16.gmra.mxu0 %v2349
      %v2833 = vpop.f32.mrf.mxu0
      %v2834 = vadd.f32 %v2420, %v2833
      %v2835 = vpop.f32.mrf.mxu0
      %v2836 = vadd.f32 %v2420, %v2835
      %2837 = vdwg.mxu0
      %2838 = vmatpush.bf16.msra.mxu0 %v2646
      %2839 = vmatpush.bf16.msra.mxu0 %v2644
      %2840 = vmatpush.bf16.msra.mxu0 %v2642
      %2841 = vmatpush.bf16.msra.mxu0 %v2640
      %2842 = vmatpush.bf16.msra.mxu0 %v2638
      %2843 = vmatpush.bf16.msra.mxu0 %v2636
      %2844 = vmatpush.bf16.msra.mxu0 %v2634
      %2845 = vmatpush.bf16.msra.mxu0 %v2632
      %2846 = vmatmul.bf16.gmra.mxu0 %v2346
      %v2847 = vpop.f32.mrf.mxu0
      %v2848 = vadd.f32 %v2829, %v2847
      %v2849 = vpop.f32.mrf.mxu0
      %v2850 = vadd.f32 %v2831, %v2849
      %2851 = vmatmul.bf16.gmra.mxu0 %v2350
      %v2852 = vpop.f32.mrf.mxu0
      %v2853 = vadd.f32 %v2834, %v2852
      %v2854 = vpop.f32.mrf.mxu0
      %v2855 = vadd.f32 %v2836, %v2854
      %2856 = vdwg.mxu0
      %2857 = vmatpush.bf16.msra.mxu0 %v2662
      %2858 = vmatpush.bf16.msra.mxu0 %v2660
      %2859 = vmatpush.bf16.msra.mxu0 %v2658
      %2860 = vmatpush.bf16.msra.mxu0 %v2656
      %2861 = vmatpush.bf16.msra.mxu0 %v2654
      %2862 = vmatpush.bf16.msra.mxu0 %v2652
      %2863 = vmatpush.bf16.msra.mxu0 %v2650
      %2864 = vmatpush.bf16.msra.mxu0 %v2648
      %2865 = vmatmul.bf16.gmra.mxu0 %v2347
      %v2866 = vpop.f32.mrf.mxu0
      %v2867 = vadd.f32 %v2848, %v2866
      %v2868 = vpop.f32.mrf.mxu0
      %v2869 = vadd.f32 %v2850, %v2868
      %2870 = vmatmul.bf16.gmra.mxu0 %v2351
      %v2871 = vpop.f32.mrf.mxu0
      %v2872 = vadd.f32 %v2853, %v2871
      %v2873 = vpop.f32.mrf.mxu0
      %v2874 = vadd.f32 %v2855, %v2873
      %2875 = vdwg.mxu0
      %2876 = vmatpush.bf16.msra.mxu0 %v2678
      %2877 = vmatpush.bf16.msra.mxu0 %v2676
      %2878 = vmatpush.bf16.msra.mxu0 %v2674
      %2879 = vmatpush.bf16.msra.mxu0 %v2672
      %2880 = vmatpush.bf16.msra.mxu0 %v2670
      %2881 = vmatpush.bf16.msra.mxu0 %v2668
      %2882 = vmatpush.bf16.msra.mxu0 %v2666
      %2883 = vmatpush.bf16.msra.mxu0 %v2664
      %2884 = vmatmul.bf16.gmra.mxu0 %v2348
      %v2885 = vpop.f32.mrf.mxu0
      %v2886 = vadd.f32 %v2867, %v2885
      %v2887 = vpop.f32.mrf.mxu0
      %v2888 = vadd.f32 %v2869, %v2887
      %2889 = vmatmul.bf16.gmra.mxu0 %v2352
      %v2890 = vpop.f32.mrf.mxu0
      %v2891 = vadd.f32 %v2872, %v2890
      %v2892 = vpop.f32.mrf.mxu0
      %v2893 = vadd.f32 %v2874, %v2892
      %2894 = vdwg.mxu0
      %v2895 = vmul.f32 %v2810, 0.2
      %v2896 = vmul.f32 %v2886, 0.2
      %v2897 = vmul.f32 %v2812, 0.2
      %v2898 = vmul.f32 %v2888, 0.2
      %v2899 = vmul.f32 %v2815, 0.2
      %v2900 = vmul.f32 %v2891, 0.2
      %v2901 = vmul.f32 %v2817, 0.2
      %v2902 = vmul.f32 %v2893, 0.2
      %v2903 = vmax.f32 %v2810, %v2895
      %v2904 = vmax.f32 %v2886, %v2896
      %v2905 = vmax.f32 %v2812, %v2897
      %v2906 = vmax.f32 %v2888, %v2898
      %v2907 = vmax.f32 %v2815, %v2899
      %v2908 = vmax.f32 %v2891, %v2900
      %v2909 = vmax.f32 %v2817, %v2901
      %v2910 = vmax.f32 %v2893, %v2902
      %v2911 = vpack.c.bf16 %v2905, %v2903
      %v2912 = vpack.c.bf16 %v2906, %v2904
      %v2913 = vpack.c.bf16 %v2909, %v2907
      %v2914 = vpack.c.bf16 %v2910, %v2908
      %v2915 = vld [vmem:[%s5] sm:$0xf]
      %v2916 = vld [vmem:[%s5 + $0x4] sm:$0xf]
      %v2917 = vld [vmem:[%s5 + $0x8] sm:$0xf]
      %v2918 = vld [vmem:[%s5 + $0xc] sm:$0xf]
      %v2919 = vld [vmem:[%s5 + $0x10] sm:$0xf]
      %v2920 = vld [vmem:[%s5 + $0x14] sm:$0xf]
      %v2921 = vld [vmem:[%s5 + $0x18] sm:$0xf]
      %v2922 = vld [vmem:[%s5 + $0x1c] sm:$0xf]
      %v2923 = vld [vmem:[%s5 + $0x20] sm:$0xf]
      %v2924 = vld [vmem:[%s5 + $0x24] sm:$0xf]
      %v2925 = vld [vmem:[%s5 + $0x28] sm:$0xf]
      %v2926 = vld [vmem:[%s5 + $0x2c] sm:$0xf]
      %v2927 = vld [vmem:[%s5 + $0x30] sm:$0xf]
      %v2928 = vld [vmem:[%s5 + $0x34] sm:$0xf]
      %v2929 = vld [vmem:[%s5 + $0x38] sm:$0xf]
      %v2930 = vld [vmem:[%s5 + $0x3c] sm:$0xf]
      %v2931 = vld [vmem:[%s5 + $0x40] sm:$0xf]
      %v2932 = vld [vmem:[%s5 + $0x44] sm:$0xf]
      %v2933 = vld [vmem:[%s5 + $0x48] sm:$0xf]
      %v2934 = vld [vmem:[%s5 + $0x4c] sm:$0xf]
      %v2935 = vld [vmem:[%s5 + $0x50] sm:$0xf]
      %v2936 = vld [vmem:[%s5 + $0x54] sm:$0xf]
      %v2937 = vld [vmem:[%s5 + $0x58] sm:$0xf]
      %v2938 = vld [vmem:[%s5 + $0x5c] sm:$0xf]
      %v2939 = vld [vmem:[%s5 + $0x60] sm:$0xf]
      %v2940 = vld [vmem:[%s5 + $0x64] sm:$0xf]
      %v2941 = vld [vmem:[%s5 + $0x68] sm:$0xf]
      %v2942 = vld [vmem:[%s5 + $0x6c] sm:$0xf]
      %v2943 = vld [vmem:[%s5 + $0x70] sm:$0xf]
      %v2944 = vld [vmem:[%s5 + $0x74] sm:$0xf]
      %v2945 = vld [vmem:[%s5 + $0x78] sm:$0xf]
      %v2946 = vld [vmem:[%s5 + $0x7c] sm:$0xf]
      %v2947 = vld [vmem:[%s6] sm:$0x1]
      %v2949 = vperm.slane %v2947, 0
      %v2983 = vunpack.c.l.b16 %v2915
      %v2984 = vunpack.c.l.b16 %v2916
      %v2985 = vunpack.c.l.b16 %v2917
      %v2986 = vunpack.c.l.b16 %v2918
      %v2987 = vunpack.c.l.b16 %v2919
      %v2988 = vunpack.c.l.b16 %v2920
      %v2989 = vunpack.c.l.b16 %v2921
      %v2990 = vunpack.c.l.b16 %v2922
      %v2991 = vunpack.c.l.b16 %v2923
      %v2992 = vunpack.c.l.b16 %v2924
      %v2993 = vunpack.c.l.b16 %v2925
      %v2994 = vunpack.c.l.b16 %v2926
      %v2995 = vunpack.c.l.b16 %v2927
      %v2996 = vunpack.c.l.b16 %v2928
      %v2997 = vunpack.c.l.b16 %v2929
      %v2998 = vunpack.c.l.b16 %v2930
      %v2999 = vunpack.c.l.b16 %v2931
      %v3000 = vunpack.c.l.b16 %v2932
      %v3001 = vunpack.c.l.b16 %v2933
      %v3002 = vunpack.c.l.b16 %v2934
      %v3003 = vunpack.c.l.b16 %v2935
      %v3004 = vunpack.c.l.b16 %v2936
      %v3005 = vunpack.c.l.b16 %v2937
      %v3006 = vunpack.c.l.b16 %v2938
      %v3007 = vunpack.c.l.b16 %v2939
      %v3008 = vunpack.c.l.b16 %v2940
      %v3009 = vunpack.c.l.b16 %v2941
      %v3010 = vunpack.c.l.b16 %v2942
      %v3011 = vunpack.c.l.b16 %v2943
      %v3012 = vunpack.c.l.b16 %v2944
      %v3013 = vunpack.c.l.b16 %v2945
      %v3014 = vunpack.c.l.b16 %v2946
      %v3015 = vpack.c.b16 %v2984, %v2983
      %v3016 = vpack.c.b16 %v2986, %v2985
      %v3017 = vpack.c.b16 %v2988, %v2987
      %v3018 = vpack.c.b16 %v2990, %v2989
      %v3019 = vpack.c.b16 %v2992, %v2991
      %v3020 = vpack.c.b16 %v2994, %v2993
      %v3021 = vpack.c.b16 %v2996, %v2995
      %v3022 = vpack.c.b16 %v2998, %v2997
      %v3023 = vpack.c.b16 %v3000, %v2999
      %v3024 = vpack.c.b16 %v3002, %v3001
      %v3025 = vpack.c.b16 %v3004, %v3003
      %v3026 = vpack.c.b16 %v3006, %v3005
      %v3027 = vpack.c.b16 %v3008, %v3007
      %v3028 = vpack.c.b16 %v3010, %v3009
      %v3029 = vpack.c.b16 %v3012, %v3011
      %v3030 = vpack.c.b16 %v3014, %v3013
      %3047 = vmatpush.bf16.msra.mxu0 %v3022
      %3048 = vmatpush.bf16.msra.mxu0 %v3021
      %3049 = vmatpush.bf16.msra.mxu0 %v3020
      %3050 = vmatpush.bf16.msra.mxu0 %v3019
      %3051 = vmatpush.bf16.msra.mxu0 %v3018
      %3052 = vmatpush.bf16.msra.mxu0 %v3017
      %3053 = vmatpush.bf16.msra.mxu0 %v3016
      %3054 = vmatpush.bf16.msra.mxu0 %v3015
      %3055 = vmatmul.bf16.gmra.mxu0 %v2911
      %v3056 = vpop.f32.mrf.mxu0
      %v3057 = vadd.f32 %v2949, %v3056
      %v3058 = vpop.f32.mrf.mxu0
      %v3059 = vadd.f32 %v2949, %v3058
      %3060 = vmatmul.bf16.gmra.mxu0 %v2913
      %v3061 = vpop.f32.mrf.mxu0
      %v3062 = vadd.f32 %v2949, %v3061
      %v3063 = vpop.f32.mrf.mxu0
      %v3064 = vadd.f32 %v2949, %v3063
      %3065 = vdwg.mxu0
      %3066 = vmatpush.bf16.msra.mxu0 %v3030
      %3067 = vmatpush.bf16.msra.mxu0 %v3029
      %3068 = vmatpush.bf16.msra.mxu0 %v3028
      %3069 = vmatpush.bf16.msra.mxu0 %v3027
      %3070 = vmatpush.bf16.msra.mxu0 %v3026
      %3071 = vmatpush.bf16.msra.mxu0 %v3025
      %3072 = vmatpush.bf16.msra.mxu0 %v3024
      %3073 = vmatpush.bf16.msra.mxu0 %v3023
      %3074 = vmatmul.bf16.gmra.mxu0 %v2912
      %v3075 = vpop.f32.mrf.mxu0
      %v3076 = vadd.f32 %v3057, %v3075
      %v3077 = vpop.f32.mrf.mxu0
      %v3078 = vadd.f32 %v3059, %v3077
      %3079 = vmatmul.bf16.gmra.mxu0 %v2914
      %v3080 = vpop.f32.mrf.mxu0
      %v3081 = vadd.f32 %v3062, %v3080
      %v3082 = vpop.f32.mrf.mxu0
      %v3083 = vadd.f32 %v3064, %v3082
      %3084 = vdwg.mxu0
      %v3085 = vmul.f32 %v3076, 0.2
      %v3086 = vmul.f32 %v3078, 0.2
      %v3087 = vmul.f32 %v3081, 0.2
      %v3088 = vmul.f32 %v3083, 0.2
      %v3089 = vmax.f32 %v3076, %v3085
      %v3090 = vmax.f32 %v3078, %v3086
      %v3091 = vmax.f32 %v3081, %v3087
      %v3092 = vmax.f32 %v3083, %v3088
      %v3093 = vpack.c.bf16 %v3090, %v3089
      %v3094 = vpack.c.bf16 %v3092, %v3091
      %v3095 = vld [vmem:[%s7] sm:$0xf]
      %v3096 = vld [vmem:[%s7 + $0x4] sm:$0xf]
      %v3097 = vld [vmem:[%s7 + $0x8] sm:$0xf]
      %v3098 = vld [vmem:[%s7 + $0xc] sm:$0xf]
      %v3099 = vld [vmem:[%s7 + $0x10] sm:$0xf]
      %v3100 = vld [vmem:[%s7 + $0x14] sm:$0xf]
      %v3101 = vld [vmem:[%s7 + $0x18] sm:$0xf]
      %v3102 = vld [vmem:[%s7 + $0x1c] sm:$0xf]
      %v3103 = vld [vmem:[%s7 + $0x20] sm:$0xf]
      %v3104 = vld [vmem:[%s7 + $0x24] sm:$0xf]
      %v3105 = vld [vmem:[%s7 + $0x28] sm:$0xf]
      %v3106 = vld [vmem:[%s7 + $0x2c] sm:$0xf]
      %v3107 = vld [vmem:[%s7 + $0x30] sm:$0xf]
      %v3108 = vld [vmem:[%s7 + $0x34] sm:$0xf]
      %v3109 = vld [vmem:[%s7 + $0x38] sm:$0xf]
      %v3110 = vld [vmem:[%s7 + $0x3c] sm:$0xf]
      %v3111 = vld [vmem:[%s8] sm:$0x1]
      %v3113 = vperm.slane %v3111, 0
      %v3131 = vunpack.c.l.b16 %v3095
      %v3132 = vunpack.c.l.b16 %v3096
      %v3133 = vunpack.c.l.b16 %v3097
      %v3134 = vunpack.c.l.b16 %v3098
      %v3135 = vunpack.c.l.b16 %v3099
      %v3136 = vunpack.c.l.b16 %v3100
      %v3137 = vunpack.c.l.b16 %v3101
      %v3138 = vunpack.c.l.b16 %v3102
      %v3139 = vunpack.c.l.b16 %v3103
      %v3140 = vunpack.c.l.b16 %v3104
      %v3141 = vunpack.c.l.b16 %v3105
      %v3142 = vunpack.c.l.b16 %v3106
      %v3143 = vunpack.c.l.b16 %v3107
      %v3144 = vunpack.c.l.b16 %v3108
      %v3145 = vunpack.c.l.b16 %v3109
      %v3146 = vunpack.c.l.b16 %v3110
      %v3147 = vpack.c.b16 %v3132, %v3131
      %v3148 = vpack.c.b16 %v3134, %v3133
      %v3149 = vpack.c.b16 %v3136, %v3135
      %v3150 = vpack.c.b16 %v3138, %v3137
      %v3151 = vpack.c.b16 %v3140, %v3139
      %v3152 = vpack.c.b16 %v3142, %v3141
      %v3153 = vpack.c.b16 %v3144, %v3143
      %v3154 = vpack.c.b16 %v3146, %v3145
      %3163 = vmatpush.bf16.msra.mxu0 %v3154
      %3164 = vmatpush.bf16.msra.mxu0 %v3153
      %3165 = vmatpush.bf16.msra.mxu0 %v3152
      %3166 = vmatpush.bf16.msra.mxu0 %v3151
      %3167 = vmatpush.bf16.msra.mxu0 %v3150
      %3168 = vmatpush.bf16.msra.mxu0 %v3149
      %3169 = vmatpush.bf16.msra.mxu0 %v3148
      %3170 = vmatpush.bf16.msra.mxu0 %v3147
      %3171 = vmatmul.bf16.gmra.mxu0 %v3093
      %v3172 = vpop.f32.mrf.mxu0
      %v3173 = vadd.f32 %v3113, %v3172
      %v3174 = vpop.f32.mrf.mxu0
      %v3175 = vadd.f32 %v3113, %v3174
      %3176 = vmatmul.bf16.gmra.mxu0 %v3094
      %v3177 = vpop.f32.mrf.mxu0
      %v3178 = vadd.f32 %v3113, %v3177
      %v3179 = vpop.f32.mrf.mxu0
      %v3180 = vadd.f32 %v3113, %v3179
      %3181 = vdwg.mxu0
      %v3182 = vsub.f32 0.0, %v3173
      %v3183 = vsub.f32 0.0, %v3175
      %v3184 = vsub.f32 0.0, %v3178
      %v3185 = vsub.f32 0.0, %v3180
      %v3186 = vmul.f32 %v3182, 1.442695
      %v3187 = vpow.pop %v3186
      %v3188 = vmul.f32 %v3183, 1.442695
      %v3189 = vpow.pop %v3188
      %v3190 = vmul.f32 %v3184, 1.442695
      %v3191 = vpow.pop %v3190
      %v3192 = vmul.f32 %v3185, 1.442695
      %v3193 = vpow.pop %v3192
      %v3194 = vadd.f32 %v3187, 1.0
      %v3195 = vadd.f32 %v3189, 1.0
      %v3196 = vadd.f32 %v3191, 1.0
      %v3197 = vadd.f32 %v3193, 1.0
      %v3198 = vrcp.pop %v3194
      %v3199 = vrcp.pop %v3195
      %v3200 = vrcp.pop %v3196
      %v3201 = vrcp.pop %v3197
      %3202 = vst [vmem:[%s337] sm:$0xff] %v3198
      %3203 = vst [vmem:[%s337 + $0x8] sm:$0xff] %v3199
      %3204 = vst [vmem:[%s337 + $0x10] sm:$0xff] %v3200
      %3205 = vst [vmem:[%s337 + $0x18] sm:$0xff] %v3201
      %s3206 = smul.u32 4, %s20
      %p3207 = scmp.lt.s32.totalorder %s3206, 7
      %s3208 = scalar_select %p3207, %s3206, 7
      %s3209 = smul.addr %s3208, 8
      %s3210 = scalar_lea.vmem %s9, %s3209
      // Predicated region
      $region57: #{discriminator_forward.1} parent=55 // pred_check
        %p3211 = pneg %p232
      $region58: #{discriminator_forward.1} parent=55 // pred_check_branch
        %3213 = sbr.rel (%p3211) target = $region60
      $region59: #{discriminator_forward.1} parent=55 // pred_region
        %s3214 = smul.u32 4, %s20
      $region60: #{discriminator_forward.1} parent=55 // pred_fallthru
        _
    $region56: #{discriminator_forward.1} parent=5 // pred_fallthru
      _
    %p3215 = scmp.le.s32.totalorder 2, %s15
    // Predicated region
    $region61: #{discriminator_forward.1} parent=5 // pred_check
      %p3216 = pneg %p3215
    $region62: #{discriminator_forward.1} parent=5 // pred_check_branch
      %3218 = sbr.rel (%p3216) target = $region64
    $region63: #{discriminator_forward.1} parent=5 // pred_region
      %s3219 = ssub.s32 %s15, 2
      // Predicated region
      $region65: #{discriminator_forward.1} parent=63 // pred_check
        %p3220 = pneg %p238
      $region66: #{discriminator_forward.1} parent=63 // pred_check_branch
        %3222 = sbr.rel (%p3220) target = $region68
      $region67: #{discriminator_forward.1} parent=63 // pred_region
        %s3223 = smul.u32 4, %s21
        %p3224 = scmp.lt.s32.totalorder %s3223, 7
        %s3225 = scalar_select %p3224, %s3223, 7
        %s3226 = smul.addr %s3225, 8
        %s3227 = scalar_lea.vmem %s9, %s3226
      $region68: #{discriminator_forward.1} parent=63 // pred_fallthru
        _
    $region64: #{discriminator_forward.1} parent=5 // pred_fallthru
      _
  $region6: #{discriminator_forward.1} parent=0 // loop_footer
    %s19 = sadd.s32 1, %s15
  $region7: #{discriminator_forward.1} parent=0 // loop_footer_branch
    %14 = sbr.rel target = $region3
  $region8: #{discriminator_forward.1} parent=0 // loop_exit
    _

</llo_original>
